<compile_context>
chip_gen: v5e
topology: v5e:2x2
jax: 0.10.0
libtpu: 0.0.40
codegen_flags: <defaults>
</compile_context>

<pallas_src>
import functools

import jax
import jax.numpy as jnp
from jax.experimental import pallas as pl
from jax.experimental.pallas import tpu as pltpu


# ------------------------------ helpers --------------------------------------
def _round_up(v, m):
    return ((v + m - 1) // m) * m


def _choose_tile_rows(N, H, W, halo_rows, target_pixels):
    """Rows per tile TH such that:
       * TH divides H                         (all blocks full / aligned)
       * TH*W is a multiple of 128            (lane-dense pixel blocks)
       * halo fits inside one neighbour block (TH*W >= halo_rows*W + halo_rows)
    Prefer the largest TH with TH*W <= target_pixels; keep grid >= 2 steps."""
    need = halo_rows * W + halo_rows
    cands = [th for th in range(1, H + 1)
             if H % th == 0 and (th * W) % 128 == 0 and th * W >= need]
    if not cands:
        # TODO(synk): generic fallback (pixel padding) for awkward H, W.
        raise ValueError(f"no valid row tile for H={H}, W={W}")
    within = [th for th in cands if th * W <= target_pixels]
    th = max(within) if within else min(cands)
    if N * (H // th) < 2:          # v7x megacore: give both TensorCores work
        smaller = [t for t in cands if t < th]
        if smaller:
            th = max(smaller)
    return th


def _fuse_params(params, rates, Cin, Cin_p, k=3):
    """Fold the per-rate 3x3 convs with the 1x1 conv (exact, f32).

    Returns Wt (Kp, R*k*k*Cin_p) with columns ordered (rate, kh, kw, channel)
    (padded channels are zero rows) and bias (Kp, 1)."""
    R = len(rates)
    Wa = params["atrous_w"].astype(jnp.float32)   # (R, Cout=Cin, Cin, k, k)  torch OIHW
    ba = params["atrous_b"].astype(jnp.float32)   # (R, Cin)
    Wl = params["lin_w"].astype(jnp.float32)      # (Kp, R*Cin, 1, 1)
    bl = params["lin_b"].astype(jnp.float32)      # (Kp,)
    Kp = Wl.shape[0]

    # (R, kh, kw, in_ch, out_ch) -> (R, k*k*Cin, Cin)
    Wa_flat = jnp.transpose(Wa, (0, 3, 4, 2, 1)).reshape(R, k * k * Cin, Cin)
    # 1x1 weight split per rate (torch.cat channel order is rate-major): [r, o, p]
    Wl_flat = jnp.transpose(Wl[:, :, 0, 0], (1, 0)).reshape(R, Cin, Kp)

    W_fused = jnp.einsum("rko,rop->rkp", Wa_flat, Wl_flat)        # (R, k*k*Cin, Kp)
    W_fused = W_fused.reshape(R, k * k, Cin, Kp)
    W_fused = jnp.pad(W_fused, ((0, 0), (0, 0), (0, Cin_p - Cin), (0, 0)))
    W_fused = W_fused.reshape(R * k * k * Cin_p, Kp)

    b_fused = jnp.einsum("rc,rcp->p", ba, Wl_flat) + bl           # (Kp,)
    return jnp.transpose(W_fused, (1, 0)), b_fused.reshape(Kp, 1), Kp


# ----------------------------- Pallas kernel ----------------------------------
def _atrous_kernel(col_ref, x_prev_ref, x_curr_ref, x_next_ref, w_ref, b_ref,
                   o_ref, *, rates, W, Cin_p, TP, k):
    # Halo'd pixel window for this row tile: [prev | curr | next] blocks of the
    # flattened, H-zero-padded image.  All tap slices below are static offsets.
    xcat = jnp.concatenate([x_prev_ref[0], x_curr_ref[0], x_next_ref[0]], axis=-1)
    xcat = xcat.astype(jnp.float32)        # f32 assembly: tile-aligned sublane concat
    col = col_ref[...]                     # (1, TP) int32: w-coordinate of each pixel

    # Column-validity masks for horizontal tap shifts (vertical out-of-image taps
    # hit real zeros because the image is zero-padded by TH rows top/bottom).
    masks = {}
    for r in rates:
        for dj in (-r, r):
            if dj not in masks:
                masks[dj] = (col >= -dj) if dj < 0 else (col < W - dj)

    half = k // 2
    taps = []
    for r in rates:                        # rate-major, then (kh, kw), then channel:
        for kh in range(k):                # must match the fused-weight column order
            for kw in range(k):
                dj = (kw - half) * r
                start = TP + (kh - half) * r * W + dj
                tap = xcat[:, start:start + TP]            # (Cin_p, TP)
                if dj != 0:
                    tap = jnp.where(masks[dj], tap, 0.0)
                taps.append(tap)
    cols = jnp.concatenate(taps, axis=0)                   # (Ktot, TP) f32

    acc = jnp.dot(w_ref[...], cols.astype(w_ref.dtype),
                  preferred_element_type=jnp.float32)      # (Kp, TP) f32
    o_ref[...] = (acc + b_ref[...]).astype(o_ref.dtype)[None]


# ------------------------------- wrapper --------------------------------------
def atrous_probability_classifier(x_nchw, params, rates=(1, 2, 4), k=3, *,
                                  target_pixels=8192,
                                  compute_dtype=jnp.bfloat16):
    """x: (N, Cin, H, W) f32 -> (N, Kp, H, W) f32.  Single fused Pallas kernel.

    target_pixels: pixels per grid step (output block ~ Kp*TP*4 bytes; 8192
    keeps the double-buffered footprint well inside every chip's scoped VMEM
    while amortising the ~0.35us per-step overhead; it is clamped to H*W)."""
    N, Cin, H, W = x_nchw.shape
    assert k % 2 == 1
    R = len(rates)
    r_max = max(rates)
    halo_rows = (k // 2) * r_max

    Cin_p = _round_up(Cin, 8)              # whole sublane tile per tap
    TH = _choose_tile_rows(N, H, W, halo_rows, target_pixels)
    TP = TH * W
    nb = H // TH
    Ktot = R * k * k * Cin_p

    Wt, bias, Kp = _fuse_params(params, rates, Cin, Cin_p, k)
    Wt = Wt.astype(compute_dtype)

    # Pad channels Cin -> Cin_p and H by TH rows of zeros top/bottom (one cheap
    # XLA pad of the small input); flatten pixels (free reshape, stays NCHW).
    x = x_nchw.astype(compute_dtype)
    xpad = jnp.pad(x, ((0, 0), (0, Cin_p - Cin), (TH, TH), (0, 0)))
    xf = xpad.reshape(N, Cin_p, (nb + 2) * TP)

    # Per-pixel column index (int32) for the horizontal boundary masks.
    colidx = jnp.tile(jnp.arange(W, dtype=jnp.int32), H).reshape(1, H * W)

    kernel = functools.partial(_atrous_kernel, rates=tuple(rates), W=W,
                               Cin_p=Cin_p, TP=TP, k=k)

    cost = pl.CostEstimate(
        flops=2 * N * H * W * Ktot * Kp,
        transcendentals=0,
        bytes_accessed=int(3 * xf.size * xf.dtype.itemsize          # halo'd x reads
                           + N * Kp * H * W * 4                     # output write
                           + Wt.size * Wt.dtype.itemsize
                           + colidx.size * 4),
    )

    out = pl.pallas_call(
        kernel,
        out_shape=jax.ShapeDtypeStruct((N, Kp, H * W), jnp.float32),
        grid=(N, nb),
        in_specs=[
            pl.BlockSpec((1, TP), lambda n, hb: (0, hb)),                 # colidx
            pl.BlockSpec((1, Cin_p, TP), lambda n, hb: (n, 0, hb)),       # prev rows
            pl.BlockSpec((1, Cin_p, TP), lambda n, hb: (n, 0, hb + 1)),   # this tile
            pl.BlockSpec((1, Cin_p, TP), lambda n, hb: (n, 0, hb + 2)),   # next rows
            pl.BlockSpec((Kp, Ktot), lambda n, hb: (0, 0)),               # fused W^T
            pl.BlockSpec((Kp, 1), lambda n, hb: (0, 0)),                  # fused bias
        ],
        out_specs=pl.BlockSpec((1, Kp, TP), lambda n, hb: (n, 0, hb)),
        compiler_params=pltpu.CompilerParams(
            dimension_semantics=("parallel", "parallel"),
            vmem_limit_bytes=48 * 1024 * 1024,
        ),
        cost_estimate=cost,
    )(colidx, xf, xf, xf, Wt, bias)

    # (N, Kp, H*W) -> (N, Kp, H, W): contiguous reshape, no transpose.
    return out.reshape(N, Kp, H, W).astype(x_nchw.dtype)


# --------------------------- pure-JAX reference --------------------------------
def reference_forward(x_nchw, params, rates=(1, 2, 4)):
    outs = []
    for idx, r in enumerate(rates):
        w = params["atrous_w"][idx]
        o = jax.lax.conv_general_dilated(
            x_nchw, w, window_strides=(1, 1), padding=[(r, r), (r, r)],
            rhs_dilation=(r, r), dimension_numbers=("NCHW", "OIHW", "NCHW"))
        outs.append(o + params["atrous_b"][idx][None, :, None, None])
    cat = jnp.concatenate(outs, axis=1)
    z = jax.lax.conv_general_dilated(
        cat, params["lin_w"], (1, 1), "VALID",
        dimension_numbers=("NCHW", "OIHW", "NCHW"))
    return z + params["lin_b"][None, :, None, None]


# ---------------------------------- main ---------------------------------------
if __name__ == "__main__":
    # Module hyper-params: in_ch=4, C=3, num_params=3, K=10 -> Kp = 90
    in_ch, C, num_params, K = 4, 3, 3, 10
    Kp = num_params * C * K
    rates = (1, 2, 4)

    key = jax.random.PRNGKey(0)
    k0, k1, k2, k3, k4 = jax.random.split(key, 5)
    params = {
        "atrous_w": jax.random.normal(k0, (len(rates), in_ch, in_ch, 3, 3), jnp.float32) * 0.1,
        "atrous_b": jax.random.normal(k1, (len(rates), in_ch), jnp.float32) * 0.1,
        "lin_w": jax.random.normal(k2, (Kp, len(rates) * in_ch, 1, 1), jnp.float32) * 0.1,
        "lin_b": jax.random.normal(k3, (Kp,), jnp.float32) * 0.1,
    }

    x = jax.random.normal(k4, (2, in_ch, 16, 16), jnp.float32)   # N C H W

    fwd_bf16 = jax.jit(lambda a: atrous_probability_classifier(a, params, rates))
    fwd_f32 = jax.jit(lambda a: atrous_probability_classifier(
        a, params, rates, compute_dtype=jnp.float32))

    out = jax.block_until_ready(fwd_bf16(x))
    assert out.shape == (2, Kp, 16, 16), out.shape

    ref = jax.block_until_ready(reference_forward(x, params, rates))

    # f32 compute path must match the conv reference tightly (fusion is exact).
    out_f32 = jax.block_until_ready(fwd_f32(x))
    assert jnp.allclose(out_f32, ref, atol=1e-4, rtol=1e-4), \
        float(jnp.max(jnp.abs(out_f32 - ref)))

    # bf16 fast path: tolerance loosened only for bf16 input/weight rounding
    # (accumulation is f32 on the MXU).
    assert jnp.allclose(out, ref, atol=3e-2, rtol=3e-2), \
        float(jnp.max(jnp.abs(out - ref)))

    print("KERNEL_OK")
</pallas_src>

<mosaic_0001>
module attributes {stable_mosaic.version = 11 : i64} {
  func.func @_atrous_kernel(%arg0: i32, %arg1: i32, %arg2: memref<1x256xi32, #tpu.memory_space<vmem>>, %arg3: memref<1x8x256xbf16, #tpu.memory_space<vmem>>, %arg4: memref<1x8x256xbf16, #tpu.memory_space<vmem>>, %arg5: memref<1x8x256xbf16, #tpu.memory_space<vmem>>, %arg6: memref<90x216xbf16, #tpu.memory_space<vmem>>, %arg7: memref<90x1xf32, #tpu.memory_space<vmem>>, %arg8: memref<1x90x256xf32, #tpu.memory_space<vmem>>) attributes {dimension_semantics = [#tpu.dimension_semantics<parallel>, #tpu.dimension_semantics<parallel>], iteration_bounds = array<i64: 2, 1>, scalar_prefetch = 0 : i64, scratch_operands = 0 : i64, tpu.core_type = #tpu.core_type<tc>, window_params = [{transform_indices = @transform_0, window_bounds = array<i64: 1, 256>}, {transform_indices = @transform_1, window_bounds = array<i64: 1, 8, 256>}, {transform_indices = @transform_2, window_bounds = array<i64: 1, 8, 256>}, {transform_indices = @transform_3, window_bounds = array<i64: 1, 8, 256>}, {pipeline_mode = #tpu.pipeline_mode<synchronous>, transform_indices = @transform_4, window_bounds = array<i64: 90, 216>}, {pipeline_mode = #tpu.pipeline_mode<synchronous>, transform_indices = @transform_5, window_bounds = array<i64: 90, 1>}, {transform_indices = @transform_6, window_bounds = array<i64: 1, 90, 256>}]} {
    %c0 = arith.constant 0 : index
    %c0_0 = arith.constant 0 : index
    %c0_1 = arith.constant 0 : index
    %0 = vector.load %arg3[%c0, %c0_0, %c0_1] : memref<1x8x256xbf16, #tpu.memory_space<vmem>>, vector<1x8x256xbf16>
    %1 = vector.shape_cast %0 : vector<1x8x256xbf16> to vector<8x256xbf16>
    %c0_2 = arith.constant 0 : index
    %c0_3 = arith.constant 0 : index
    %c0_4 = arith.constant 0 : index
    %2 = vector.load %arg4[%c0_2, %c0_3, %c0_4] : memref<1x8x256xbf16, #tpu.memory_space<vmem>>, vector<1x8x256xbf16>
    %3 = vector.shape_cast %2 : vector<1x8x256xbf16> to vector<8x256xbf16>
    %c0_5 = arith.constant 0 : index
    %c0_6 = arith.constant 0 : index
    %c0_7 = arith.constant 0 : index
    %4 = vector.load %arg5[%c0_5, %c0_6, %c0_7] : memref<1x8x256xbf16, #tpu.memory_space<vmem>>, vector<1x8x256xbf16>
    %5 = vector.shape_cast %4 : vector<1x8x256xbf16> to vector<8x256xbf16>
    %6 = tpu.concatenate %1, %3, %5 in 1 : vector<8x256xbf16>, vector<8x256xbf16>, vector<8x256xbf16> -> vector<8x768xbf16>
    %7 = arith.extf %6 : vector<8x768xbf16> to vector<8x768xf32>
    %c0_8 = arith.constant 0 : index
    %c0_9 = arith.constant 0 : index
    %8 = vector.load %arg2[%c0_8, %c0_9] : memref<1x256xi32, #tpu.memory_space<vmem>>, vector<1x256xi32>
    %c1_i32 = arith.constant 1 : i32
    %9 = vector.broadcast %c1_i32 : i32 to vector<1x256xi32>
    %10 = arith.cmpi sge, %8, %9 : vector<1x256xi32>
    %c15_i32 = arith.constant 15 : i32
    %11 = vector.broadcast %c15_i32 : i32 to vector<1x256xi32>
    %12 = arith.cmpi slt, %8, %11 : vector<1x256xi32>
    %c2_i32 = arith.constant 2 : i32
    %13 = vector.broadcast %c2_i32 : i32 to vector<1x256xi32>
    %14 = arith.cmpi sge, %8, %13 : vector<1x256xi32>
    %c14_i32 = arith.constant 14 : i32
    %15 = vector.broadcast %c14_i32 : i32 to vector<1x256xi32>
    %16 = arith.cmpi slt, %8, %15 : vector<1x256xi32>
    %c4_i32 = arith.constant 4 : i32
    %17 = vector.broadcast %c4_i32 : i32 to vector<1x256xi32>
    %18 = arith.cmpi sge, %8, %17 : vector<1x256xi32>
    %c12_i32 = arith.constant 12 : i32
    %19 = vector.broadcast %c12_i32 : i32 to vector<1x256xi32>
    %20 = arith.cmpi slt, %8, %19 : vector<1x256xi32>
    %21 = vector.extract_strided_slice %7 {offsets = [0, 239], sizes = [8, 256], strides = [1, 1]} : vector<8x768xf32> to vector<8x256xf32>
    %cst = arith.constant 0.000000e+00 : f32
    %22 = vector.shape_cast %10 : vector<1x256xi1> to vector<1x256xi1>
    %23 = vector.broadcast %22 : vector<1x256xi1> to vector<8x256xi1>
    %24 = vector.broadcast %cst : f32 to vector<8x256xf32>
    %25 = arith.select %23, %21, %24 : vector<8x256xi1>, vector<8x256xf32>
    %26 = vector.extract_strided_slice %7 {offsets = [0, 240], sizes = [8, 256], strides = [1, 1]} : vector<8x768xf32> to vector<8x256xf32>
    %27 = vector.extract_strided_slice %7 {offsets = [0, 241], sizes = [8, 256], strides = [1, 1]} : vector<8x768xf32> to vector<8x256xf32>
    %cst_10 = arith.constant 0.000000e+00 : f32
    %28 = vector.shape_cast %12 : vector<1x256xi1> to vector<1x256xi1>
    %29 = vector.broadcast %28 : vector<1x256xi1> to vector<8x256xi1>
    %30 = vector.broadcast %cst_10 : f32 to vector<8x256xf32>
    %31 = arith.select %29, %27, %30 : vector<8x256xi1>, vector<8x256xf32>
    %32 = vector.extract_strided_slice %7 {offsets = [0, 255], sizes = [8, 256], strides = [1, 1]} : vector<8x768xf32> to vector<8x256xf32>
    %cst_11 = arith.constant 0.000000e+00 : f32
    %33 = vector.shape_cast %10 : vector<1x256xi1> to vector<1x256xi1>
    %34 = vector.broadcast %33 : vector<1x256xi1> to vector<8x256xi1>
    %35 = vector.broadcast %cst_11 : f32 to vector<8x256xf32>
    %36 = arith.select %34, %32, %35 : vector<8x256xi1>, vector<8x256xf32>
    %37 = vector.extract_strided_slice %7 {offsets = [0, 256], sizes = [8, 256], strides = [1, 1]} : vector<8x768xf32> to vector<8x256xf32>
    %38 = vector.extract_strided_slice %7 {offsets = [0, 257], sizes = [8, 256], strides = [1, 1]} : vector<8x768xf32> to vector<8x256xf32>
    %cst_12 = arith.constant 0.000000e+00 : f32
    %39 = vector.shape_cast %12 : vector<1x256xi1> to vector<1x256xi1>
    %40 = vector.broadcast %39 : vector<1x256xi1> to vector<8x256xi1>
    %41 = vector.broadcast %cst_12 : f32 to vector<8x256xf32>
    %42 = arith.select %40, %38, %41 : vector<8x256xi1>, vector<8x256xf32>
    %43 = vector.extract_strided_slice %7 {offsets = [0, 271], sizes = [8, 256], strides = [1, 1]} : vector<8x768xf32> to vector<8x256xf32>
    %cst_13 = arith.constant 0.000000e+00 : f32
    %44 = vector.shape_cast %10 : vector<1x256xi1> to vector<1x256xi1>
    %45 = vector.broadcast %44 : vector<1x256xi1> to vector<8x256xi1>
    %46 = vector.broadcast %cst_13 : f32 to vector<8x256xf32>
    %47 = arith.select %45, %43, %46 : vector<8x256xi1>, vector<8x256xf32>
    %48 = vector.extract_strided_slice %7 {offsets = [0, 272], sizes = [8, 256], strides = [1, 1]} : vector<8x768xf32> to vector<8x256xf32>
    %49 = vector.extract_strided_slice %7 {offsets = [0, 273], sizes = [8, 256], strides = [1, 1]} : vector<8x768xf32> to vector<8x256xf32>
    %cst_14 = arith.constant 0.000000e+00 : f32
    %50 = vector.shape_cast %12 : vector<1x256xi1> to vector<1x256xi1>
    %51 = vector.broadcast %50 : vector<1x256xi1> to vector<8x256xi1>
    %52 = vector.broadcast %cst_14 : f32 to vector<8x256xf32>
    %53 = arith.select %51, %49, %52 : vector<8x256xi1>, vector<8x256xf32>
    %54 = vector.extract_strided_slice %7 {offsets = [0, 222], sizes = [8, 256], strides = [1, 1]} : vector<8x768xf32> to vector<8x256xf32>
    %cst_15 = arith.constant 0.000000e+00 : f32
    %55 = vector.shape_cast %14 : vector<1x256xi1> to vector<1x256xi1>
    %56 = vector.broadcast %55 : vector<1x256xi1> to vector<8x256xi1>
    %57 = vector.broadcast %cst_15 : f32 to vector<8x256xf32>
    %58 = arith.select %56, %54, %57 : vector<8x256xi1>, vector<8x256xf32>
    %59 = vector.extract_strided_slice %7 {offsets = [0, 224], sizes = [8, 256], strides = [1, 1]} : vector<8x768xf32> to vector<8x256xf32>
    %60 = vector.extract_strided_slice %7 {offsets = [0, 226], sizes = [8, 256], strides = [1, 1]} : vector<8x768xf32> to vector<8x256xf32>
    %cst_16 = arith.constant 0.000000e+00 : f32
    %61 = vector.shape_cast %16 : vector<1x256xi1> to vector<1x256xi1>
    %62 = vector.broadcast %61 : vector<1x256xi1> to vector<8x256xi1>
    %63 = vector.broadcast %cst_16 : f32 to vector<8x256xf32>
    %64 = arith.select %62, %60, %63 : vector<8x256xi1>, vector<8x256xf32>
    %65 = vector.extract_strided_slice %7 {offsets = [0, 254], sizes = [8, 256], strides = [1, 1]} : vector<8x768xf32> to vector<8x256xf32>
    %cst_17 = arith.constant 0.000000e+00 : f32
    %66 = vector.shape_cast %14 : vector<1x256xi1> to vector<1x256xi1>
    %67 = vector.broadcast %66 : vector<1x256xi1> to vector<8x256xi1>
    %68 = vector.broadcast %cst_17 : f32 to vector<8x256xf32>
    %69 = arith.select %67, %65, %68 : vector<8x256xi1>, vector<8x256xf32>
    %70 = vector.extract_strided_slice %7 {offsets = [0, 256], sizes = [8, 256], strides = [1, 1]} : vector<8x768xf32> to vector<8x256xf32>
    %71 = vector.extract_strided_slice %7 {offsets = [0, 258], sizes = [8, 256], strides = [1, 1]} : vector<8x768xf32> to vector<8x256xf32>
    %cst_18 = arith.constant 0.000000e+00 : f32
    %72 = vector.shape_cast %16 : vector<1x256xi1> to vector<1x256xi1>
    %73 = vector.broadcast %72 : vector<1x256xi1> to vector<8x256xi1>
    %74 = vector.broadcast %cst_18 : f32 to vector<8x256xf32>
    %75 = arith.select %73, %71, %74 : vector<8x256xi1>, vector<8x256xf32>
    %76 = vector.extract_strided_slice %7 {offsets = [0, 286], sizes = [8, 256], strides = [1, 1]} : vector<8x768xf32> to vector<8x256xf32>
    %cst_19 = arith.constant 0.000000e+00 : f32
    %77 = vector.shape_cast %14 : vector<1x256xi1> to vector<1x256xi1>
    %78 = vector.broadcast %77 : vector<1x256xi1> to vector<8x256xi1>
    %79 = vector.broadcast %cst_19 : f32 to vector<8x256xf32>
    %80 = arith.select %78, %76, %79 : vector<8x256xi1>, vector<8x256xf32>
    %81 = vector.extract_strided_slice %7 {offsets = [0, 288], sizes = [8, 256], strides = [1, 1]} : vector<8x768xf32> to vector<8x256xf32>
    %82 = vector.extract_strided_slice %7 {offsets = [0, 290], sizes = [8, 256], strides = [1, 1]} : vector<8x768xf32> to vector<8x256xf32>
    %cst_20 = arith.constant 0.000000e+00 : f32
    %83 = vector.shape_cast %16 : vector<1x256xi1> to vector<1x256xi1>
    %84 = vector.broadcast %83 : vector<1x256xi1> to vector<8x256xi1>
    %85 = vector.broadcast %cst_20 : f32 to vector<8x256xf32>
    %86 = arith.select %84, %82, %85 : vector<8x256xi1>, vector<8x256xf32>
    %87 = vector.extract_strided_slice %7 {offsets = [0, 188], sizes = [8, 256], strides = [1, 1]} : vector<8x768xf32> to vector<8x256xf32>
    %cst_21 = arith.constant 0.000000e+00 : f32
    %88 = vector.shape_cast %18 : vector<1x256xi1> to vector<1x256xi1>
    %89 = vector.broadcast %88 : vector<1x256xi1> to vector<8x256xi1>
    %90 = vector.broadcast %cst_21 : f32 to vector<8x256xf32>
    %91 = arith.select %89, %87, %90 : vector<8x256xi1>, vector<8x256xf32>
    %92 = vector.extract_strided_slice %7 {offsets = [0, 192], sizes = [8, 256], strides = [1, 1]} : vector<8x768xf32> to vector<8x256xf32>
    %93 = vector.extract_strided_slice %7 {offsets = [0, 196], sizes = [8, 256], strides = [1, 1]} : vector<8x768xf32> to vector<8x256xf32>
    %cst_22 = arith.constant 0.000000e+00 : f32
    %94 = vector.shape_cast %20 : vector<1x256xi1> to vector<1x256xi1>
    %95 = vector.broadcast %94 : vector<1x256xi1> to vector<8x256xi1>
    %96 = vector.broadcast %cst_22 : f32 to vector<8x256xf32>
    %97 = arith.select %95, %93, %96 : vector<8x256xi1>, vector<8x256xf32>
    %98 = vector.extract_strided_slice %7 {offsets = [0, 252], sizes = [8, 256], strides = [1, 1]} : vector<8x768xf32> to vector<8x256xf32>
    %cst_23 = arith.constant 0.000000e+00 : f32
    %99 = vector.shape_cast %18 : vector<1x256xi1> to vector<1x256xi1>
    %100 = vector.broadcast %99 : vector<1x256xi1> to vector<8x256xi1>
    %101 = vector.broadcast %cst_23 : f32 to vector<8x256xf32>
    %102 = arith.select %100, %98, %101 : vector<8x256xi1>, vector<8x256xf32>
    %103 = vector.extract_strided_slice %7 {offsets = [0, 256], sizes = [8, 256], strides = [1, 1]} : vector<8x768xf32> to vector<8x256xf32>
    %104 = vector.extract_strided_slice %7 {offsets = [0, 260], sizes = [8, 256], strides = [1, 1]} : vector<8x768xf32> to vector<8x256xf32>
    %cst_24 = arith.constant 0.000000e+00 : f32
    %105 = vector.shape_cast %20 : vector<1x256xi1> to vector<1x256xi1>
    %106 = vector.broadcast %105 : vector<1x256xi1> to vector<8x256xi1>
    %107 = vector.broadcast %cst_24 : f32 to vector<8x256xf32>
    %108 = arith.select %106, %104, %107 : vector<8x256xi1>, vector<8x256xf32>
    %109 = vector.extract_strided_slice %7 {offsets = [0, 316], sizes = [8, 256], strides = [1, 1]} : vector<8x768xf32> to vector<8x256xf32>
    %cst_25 = arith.constant 0.000000e+00 : f32
    %110 = vector.shape_cast %18 : vector<1x256xi1> to vector<1x256xi1>
    %111 = vector.broadcast %110 : vector<1x256xi1> to vector<8x256xi1>
    %112 = vector.broadcast %cst_25 : f32 to vector<8x256xf32>
    %113 = arith.select %111, %109, %112 : vector<8x256xi1>, vector<8x256xf32>
    %114 = vector.extract_strided_slice %7 {offsets = [0, 320], sizes = [8, 256], strides = [1, 1]} : vector<8x768xf32> to vector<8x256xf32>
    %115 = vector.extract_strided_slice %7 {offsets = [0, 324], sizes = [8, 256], strides = [1, 1]} : vector<8x768xf32> to vector<8x256xf32>
    %cst_26 = arith.constant 0.000000e+00 : f32
    %116 = vector.shape_cast %20 : vector<1x256xi1> to vector<1x256xi1>
    %117 = vector.broadcast %116 : vector<1x256xi1> to vector<8x256xi1>
    %118 = vector.broadcast %cst_26 : f32 to vector<8x256xf32>
    %119 = arith.select %117, %115, %118 : vector<8x256xi1>, vector<8x256xf32>
    %120 = tpu.concatenate %25, %26, %31, %36, %37, %42, %47, %48, %53, %58, %59, %64, %69, %70, %75, %80 in 0 : vector<8x256xf32>, vector<8x256xf32>, vector<8x256xf32>, vector<8x256xf32>, vector<8x256xf32>, vector<8x256xf32>, vector<8x256xf32>, vector<8x256xf32>, vector<8x256xf32>, vector<8x256xf32>, vector<8x256xf32>, vector<8x256xf32>, vector<8x256xf32>, vector<8x256xf32>, vector<8x256xf32>, vector<8x256xf32> -> vector<128x256xf32>
    %121 = tpu.concatenate %81, %86, %91, %92, %97, %102, %103, %108, %113, %114, %119 in 0 : vector<8x256xf32>, vector<8x256xf32>, vector<8x256xf32>, vector<8x256xf32>, vector<8x256xf32>, vector<8x256xf32>, vector<8x256xf32>, vector<8x256xf32>, vector<8x256xf32>, vector<8x256xf32>, vector<8x256xf32> -> vector<88x256xf32>
    %122 = tpu.concatenate %120, %121 in 0 : vector<128x256xf32>, vector<88x256xf32> -> vector<216x256xf32>
    %c0_27 = arith.constant 0 : index
    %c0_28 = arith.constant 0 : index
    %123 = vector.load %arg6[%c0_27, %c0_28] : memref<90x216xbf16, #tpu.memory_space<vmem>>, vector<90x216xbf16>
    %124 = arith.truncf %122 : vector<216x256xf32> to vector<216x256xbf16>
    %cst_29 = arith.constant dense<0.000000e+00> : vector<90x256xf32>
    %125 = tpu.matmul %123, %124, %cst_29 {dimension_numbers = #tpu.dot_dimension_numbers<[1], [0], [0], [1], [0, 0, 1, 1], [], []>} : vector<90x216xbf16>, vector<216x256xbf16>, vector<90x256xf32> -> vector<90x256xf32>
    %c0_30 = arith.constant 0 : index
    %c0_31 = arith.constant 0 : index
    %126 = vector.load %arg7[%c0_30, %c0_31] : memref<90x1xf32, #tpu.memory_space<vmem>>, vector<90x1xf32>
    %127 = vector.broadcast %126 : vector<90x1xf32> to vector<90x256xf32>
    %128 = arith.addf %125, %127 : vector<90x256xf32>
    %129 = vector.shape_cast %128 : vector<90x256xf32> to vector<1x90x256xf32>
    %c0_32 = arith.constant 0 : index
    %c0_33 = arith.constant 0 : index
    %c0_34 = arith.constant 0 : index
    %130 = vector.load %arg8[%c0_32, %c0_33, %c0_34] : memref<1x90x256xf32, #tpu.memory_space<vmem>>, vector<1x90x256xf32>
    tpu.vector_store %arg8[%c0_32, %c0_33, %c0_34], %129 {strides = array<i32>} : memref<1x90x256xf32, #tpu.memory_space<vmem>>, vector<1x90x256xf32>,
    return
  }
  func.func @transform_0(%arg0: i32, %arg1: i32) -> (i32, i32) {
    %c0_i32 = arith.constant 0 : i32
    %c0_i32_0 = arith.constant 0 : i32
    return %c0_i32, %arg1 : i32, i32
  }
  func.func @transform_1(%arg0: i32, %arg1: i32) -> (i32, i32, i32) {
    %c0_i32 = arith.constant 0 : i32
    %c0_i32_0 = arith.constant 0 : i32
    return %arg0, %c0_i32, %arg1 : i32, i32, i32
  }
  func.func @transform_2(%arg0: i32, %arg1: i32) -> (i32, i32, i32) {
    %c1_i32 = arith.constant 1 : i32
    %0 = arith.addi %arg1, %c1_i32 : i32
    %c0_i32 = arith.constant 0 : i32
    %c0_i32_0 = arith.constant 0 : i32
    return %arg0, %c0_i32, %0 : i32, i32, i32
  }
  func.func @transform_3(%arg0: i32, %arg1: i32) -> (i32, i32, i32) {
    %c2_i32 = arith.constant 2 : i32
    %0 = arith.addi %arg1, %c2_i32 : i32
    %c0_i32 = arith.constant 0 : i32
    %c0_i32_0 = arith.constant 0 : i32
    return %arg0, %c0_i32, %0 : i32, i32, i32
  }
  func.func @transform_4(%arg0: i32, %arg1: i32) -> (i32, i32) {
    %c0_i32 = arith.constant 0 : i32
    %c0_i32_0 = arith.constant 0 : i32
    %c0_i32_1 = arith.constant 0 : i32
    return %c0_i32, %c0_i32_0 : i32, i32
  }
  func.func @transform_5(%arg0: i32, %arg1: i32) -> (i32, i32) {
    %c0_i32 = arith.constant 0 : i32
    %c0_i32_0 = arith.constant 0 : i32
    %c0_i32_1 = arith.constant 0 : i32
    return %c0_i32, %c0_i32_0 : i32, i32
  }
  func.func @transform_6(%arg0: i32, %arg1: i32) -> (i32, i32, i32) {
    %c0_i32 = arith.constant 0 : i32
    %c0_i32_0 = arith.constant 0 : i32
    return %arg0, %c0_i32, %arg1 : i32, i32, i32
  }
}

</mosaic_0001>

<llo_original>
// kernel: tile.9
$region0: #{tile.9}
  %s0 = inlined_call_operand.vmem [shape: s32[16,16], index: 0, kind: input, shape index: {}]
  %s1 = inlined_call_operand.vmem [shape: s32[1,256], index: 1, kind: output, shape index: {}]
  $region1: #{tile.9} parent=0
    #allocation0 [shape = 'u8[8192]{0}', space=vmem, size = 0x2000, scoped, tag = 'scoped mem for output reshape']
    %s2 = smov 3
    %v3 = vld [vmem:[%s0] ss:$8 sm:%s2]
    %vm4 = vcmask 130048
    %5 = vst.msk [vmem:[#allocation0] ss:$8 sm:$0x3] %vm4, %v3
    %s6 = scalar_lea.vmem %s0, 7
    %s7 = smov 3
    %v8 = vld [vmem:[%s6] ss:$8 sm:%s7]
    %9 = vrot.lane.b32.xlu0 %v8, 112
    %v10 = vpop.permute.xlu0 %9
    %vm11 = vcmask 1048448
    %12 = vst.msk [vmem:[#allocation0] ss:$8 sm:$0x3] %vm11, %v10
    %s13 = scalar_lea.vmem %s0, 6
    %s14 = smov 3
    %v15 = vld [vmem:[%s13] ss:$8 sm:%s14]
    %16 = vrot.lane.b32.xlu0 %v15, 96
    %v17 = vpop.permute.xlu0 %16
    %vm18 = vcmask 917248
    %19 = vst.msk [vmem:[#allocation0] ss:$8 sm:$0x3] %vm18, %v17
    %s20 = scalar_lea.vmem %s0, 5
    %s21 = smov 3
    %v22 = vld [vmem:[%s20] ss:$8 sm:%s21]
    %23 = vrot.lane.b32.xlu0 %v22, 80
    %v24 = vpop.permute.xlu0 %23
    %vm25 = vcmask 786048
    %26 = vst.msk [vmem:[#allocation0] ss:$8 sm:$0x3] %vm25, %v24
    %s27 = scalar_lea.vmem %s0, 4
    %s28 = smov 3
    %v29 = vld [vmem:[%s27] ss:$8 sm:%s28]
    %30 = vrot.lane.b32.xlu0 %v29, 64
    %v31 = vpop.permute.xlu0 %30
    %vm32 = vcmask 654848
    %33 = vst.msk [vmem:[#allocation0] ss:$8 sm:$0x3] %vm32, %v31
    %s34 = scalar_lea.vmem %s0, 3
    %s35 = smov 3
    %v36 = vld [vmem:[%s34] ss:$8 sm:%s35]
    %37 = vrot.lane.b32.xlu0 %v36, 48
    %v38 = vpop.permute.xlu0 %37
    %vm39 = vcmask 523648
    %40 = vst.msk [vmem:[#allocation0] ss:$8 sm:$0x3] %vm39, %v38
    %s41 = scalar_lea.vmem %s0, 2
    %s42 = smov 3
    %v43 = vld [vmem:[%s41] ss:$8 sm:%s42]
    %44 = vrot.lane.b32.xlu0 %v43, 32
    %v45 = vpop.permute.xlu0 %44
    %vm46 = vcmask 392448
    %47 = vst.msk [vmem:[#allocation0] ss:$8 sm:$0x3] %vm46, %v45
    %s48 = scalar_lea.vmem %s0, 1
    %s49 = smov 3
    %v50 = vld [vmem:[%s48] ss:$8 sm:%s49]
    %51 = vrot.lane.b32.xlu0 %v50, 16
    %v52 = vpop.permute.xlu0 %51
    %vm53 = vcmask 261248
    %54 = vst.msk [vmem:[#allocation0] ss:$8 sm:$0x3] %vm53, %v52
    %s56 = ssub.s32 2, 1
    %v57 = vld [vmem:[#allocation0] sm:%s56]
    %s59 = ssub.s32 2, 1
    %60 = vst [vmem:[%s1] sm:%s59] %v57
    %s61 = scalar_lea.vmem [#allocation0], 8
    %v62 = vld [vmem:[%s61] sm:%s56]
    %s64 = ssub.s32 2, 1
    %s65 = scalar_lea.vmem %s1, 1
    %66 = vst [vmem:[%s65] sm:%s64] %v62

// kernel: _lambda_.1
$region0: #{_lambda_.1}
  #allocation0 [shape = 'u32[]', space=smem, size = 0x4, offset = 0x4, fixed_abs, tag = 'smem constant byte address 0x4 - core index']
  #allocation1 [shape = 'u32[72,128]{1,0:T(1,128)}', space=vmem, size = 0x9000, scoped, tag = 'internal scratch']
  %s0 = inlined_call_operand.vmem [shape: s32[1,256], index: 0, kind: input, shape index: {}]
  %s1 = inlined_call_operand.vmem [shape: bf16[2,8,768], index: 1, kind: input, shape index: {}, may-alias: {1,2,3}]
  %s2 = inlined_call_operand.vmem [shape: bf16[2,8,768], index: 2, kind: input, shape index: {}, may-alias: {1,2,3}]
  %s3 = inlined_call_operand.vmem [shape: bf16[2,8,768], index: 3, kind: input, shape index: {}, may-alias: {1,2,3}]
  %s4 = inlined_call_operand.vmem [shape: bf16[90,216], index: 4, kind: input, shape index: {}]
  %s5 = inlined_call_operand.vmem [shape: f32[90,1], index: 5, kind: input, shape index: {}]
  %s6 = inlined_call_operand.vmem [shape: f32[2,90,256], index: 6, kind: output, shape index: {}]
  %s7 = sld [smem:[#allocation0]]
  $region57: #{_lambda_.1} parent=0
    _
  %s9 = ssub.s32 1, %s7
  %s10 = scalar_select 0, %s9, %s7
  loop: start=0, step=1, limit=4
  $region2: #{_lambda_.1} parent=0 // loop_pre_header
    _
  $region3: #{_lambda_.1} parent=0 // loop_header
    %s12 = sphi 0, %s16
    %p13 = scmp.ge.s32.totalorder %s12, 4
    %s19 = sphi 0, %s31
    %s20 = sphi 0, %s27
    %s21 = sphi 0, %s19
    %s22 = sphi 0, %s20
    %s23 = sphi 0, %s21
    %s24 = sphi 0, %s22
    %s34 = sphi 0, %s36
    %s37 = sphi 0, %s34
    %s38 = sphi 0, %s37
    %s54 = sphi 0, %s38
    %s62 = sphi 0, %s64
    %s65 = sphi 0, %s62
    %s66 = sphi 0, %s65
    %s82 = sphi 0, %s66
    %s92 = sphi 0, %s94
    %s95 = sphi 0, %s92
    %s96 = sphi 0, %s95
    %s112 = sphi 0, %s96
    %s122 = sphi 0, %s124
    %s125 = sphi 0, %s122
    %s126 = sphi 0, %s125
    %s142 = sphi 0, %s126
    %s146 = sphi 0, %s146
    %s148 = sphi 0, %s146
    %s149 = sphi 0, %s148
    %s163 = sphi 0, %s149
    %s167 = sphi 0, %s167
    %s169 = sphi 0, %s167
    %s170 = sphi 0, %s169
    %s184 = sphi 0, %s170
    %s192 = sphi 0, %s194
    %s195 = sphi 0, %s192
    %s196 = sphi 0, %s195
    %s212 = sphi 0, %s196
  $region4: #{_lambda_.1} parent=0 // loop_header_branch
    %15 = sbr.rel (%p13) target = $region8
  $region5: #{_lambda_.1} parent=0 // loop_body
    %s17 = ssub.s32 %s12, 1
    %s18 = ssub.s32 %s12, 2
    %s25 = sadd.s32 1, %s20
    %p26 = scmp.ge.s32.totalorder %s25, 1
    %s27 = scalar_select %p26, 0, %s25
    %s28 = sadd.s32 1, %s19
    %s29 = scalar_select %p26, %s28, %s19
    %p30 = scmp.ge.s32.totalorder %s29, 2
    %s31 = scalar_select %p30, 0, %s29
    %s32 = ssub.s32 %s20, %s27
    %p33 = scmp.eq.s32.totalorder %s32, 0
    %s35 = sadd.s32 %s34, 1
    %s36 = scalar_select %p33, %s34, %s35
    %p39 = pneg %p33
    %p40 = scmp.eq.s32.totalorder %s12, 1
    %p41 = por %p39, %p40
    %p42 = scmp.ne.s32.totalorder %s34, %s37
    %p43 = scmp.eq.s32.totalorder %s12, 0
    %p44 = por %p42, %p43
    %p45 = scmp.ne.s32.totalorder %s34, %s37
    %p46 = scmp.eq.s32.totalorder %s17, 1
    %p47 = por %p45, %p46
    %p48 = scmp.ne.s32.totalorder %s37, %s38
    %p49 = scmp.eq.s32.totalorder %s17, 0
    %p50 = por %p48, %p49
    %p51 = scmp.ne.s32.totalorder %s37, %s38
    %p52 = scmp.eq.s32.totalorder %s18, 1
    %p53 = por %p51, %p52
    %p55 = scmp.ne.s32.totalorder %s38, %s54
    %p56 = scmp.eq.s32.totalorder %s18, 0
    %p57 = por %p55, %p56
    %s58 = ssub.s32 %s19, %s31
    %s59 = ssub.s32 %s20, %s27
    %s60 = sor.u32 %s58, %s59
    %p61 = scmp.eq.s32.totalorder %s60, 0
    %s63 = sadd.s32 %s62, 1
    %s64 = scalar_select %p61, %s62, %s63
    %p67 = pneg %p61
    %p68 = scmp.eq.s32.totalorder %s12, 1
    %p69 = por %p67, %p68
    %p70 = scmp.ne.s32.totalorder %s62, %s65
    %p71 = scmp.eq.s32.totalorder %s12, 0
    %p72 = por %p70, %p71
    %p73 = scmp.ne.s32.totalorder %s62, %s65
    %p74 = scmp.eq.s32.totalorder %s17, 1
    %p75 = por %p73, %p74
    %p76 = scmp.ne.s32.totalorder %s65, %s66
    %p77 = scmp.eq.s32.totalorder %s17, 0
    %p78 = por %p76, %p77
    %p79 = scmp.ne.s32.totalorder %s65, %s66
    %p80 = scmp.eq.s32.totalorder %s18, 1
    %p81 = por %p79, %p80
    %p83 = scmp.ne.s32.totalorder %s66, %s82
    %p84 = scmp.eq.s32.totalorder %s18, 0
    %p85 = por %p83, %p84
    %s86 = sadd.s32 %s20, 1
    %s87 = sadd.s32 %s27, 1
    %s88 = ssub.s32 %s19, %s31
    %s89 = ssub.s32 %s86, %s87
    %s90 = sor.u32 %s88, %s89
    %p91 = scmp.eq.s32.totalorder %s90, 0
    %s93 = sadd.s32 %s92, 1
    %s94 = scalar_select %p91, %s92, %s93
    %p97 = pneg %p91
    %p98 = scmp.eq.s32.totalorder %s12, 1
    %p99 = por %p97, %p98
    %p100 = scmp.ne.s32.totalorder %s92, %s95
    %p101 = scmp.eq.s32.totalorder %s12, 0
    %p102 = por %p100, %p101
    %p103 = scmp.ne.s32.totalorder %s92, %s95
    %p104 = scmp.eq.s32.totalorder %s17, 1
    %p105 = por %p103, %p104
    %p106 = scmp.ne.s32.totalorder %s95, %s96
    %p107 = scmp.eq.s32.totalorder %s17, 0
    %p108 = por %p106, %p107
    %p109 = scmp.ne.s32.totalorder %s95, %s96
    %p110 = scmp.eq.s32.totalorder %s18, 1
    %p111 = por %p109, %p110
    %p113 = scmp.ne.s32.totalorder %s96, %s112
    %p114 = scmp.eq.s32.totalorder %s18, 0
    %p115 = por %p113, %p114
    %s116 = sadd.s32 %s20, 2
    %s117 = sadd.s32 %s27, 2
    %s118 = ssub.s32 %s19, %s31
    %s119 = ssub.s32 %s116, %s117
    %s120 = sor.u32 %s118, %s119
    %p121 = scmp.eq.s32.totalorder %s120, 0
    %s123 = sadd.s32 %s122, 1
    %s124 = scalar_select %p121, %s122, %s123
    %p127 = pneg %p121
    %p128 = scmp.eq.s32.totalorder %s12, 1
    %p129 = por %p127, %p128
    %p130 = scmp.ne.s32.totalorder %s122, %s125
    %p131 = scmp.eq.s32.totalorder %s12, 0
    %p132 = por %p130, %p131
    %p133 = scmp.ne.s32.totalorder %s122, %s125
    %p134 = scmp.eq.s32.totalorder %s17, 1
    %p135 = por %p133, %p134
    %p136 = scmp.ne.s32.totalorder %s125, %s126
    %p137 = scmp.eq.s32.totalorder %s17, 0
    %p138 = por %p136, %p137
    %p139 = scmp.ne.s32.totalorder %s125, %s126
    %p140 = scmp.eq.s32.totalorder %s18, 1
    %p141 = por %p139, %p140
    %p143 = scmp.ne.s32.totalorder %s126, %s142
    %p144 = scmp.eq.s32.totalorder %s18, 0
    %p145 = por %p143, %p144
    %s147 = sadd.s32 %s146, 1
    %p150 = scmp.eq.s32.totalorder %s12, 1
    %p151 = scmp.ne.s32.totalorder %s146, %s148
    %p152 = scmp.eq.s32.totalorder %s12, 0
    %p153 = por %p151, %p152
    %p154 = scmp.ne.s32.totalorder %s146, %s148
    %p155 = scmp.eq.s32.totalorder %s17, 1
    %p156 = por %p154, %p155
    %p157 = scmp.ne.s32.totalorder %s148, %s149
    %p158 = scmp.eq.s32.totalorder %s17, 0
    %p159 = por %p157, %p158
    %p160 = scmp.ne.s32.totalorder %s148, %s149
    %p161 = scmp.eq.s32.totalorder %s18, 1
    %p162 = por %p160, %p161
    %p164 = scmp.ne.s32.totalorder %s149, %s163
    %p165 = scmp.eq.s32.totalorder %s18, 0
    %p166 = por %p164, %p165
    %s168 = sadd.s32 %s167, 1
    %p171 = scmp.eq.s32.totalorder %s12, 1
    %p172 = scmp.ne.s32.totalorder %s167, %s169
    %p173 = scmp.eq.s32.totalorder %s12, 0
    %p174 = por %p172, %p173
    %p175 = scmp.ne.s32.totalorder %s167, %s169
    %p176 = scmp.eq.s32.totalorder %s17, 1
    %p177 = por %p175, %p176
    %p178 = scmp.ne.s32.totalorder %s169, %s170
    %p179 = scmp.eq.s32.totalorder %s17, 0
    %p180 = por %p178, %p179
    %p181 = scmp.ne.s32.totalorder %s169, %s170
    %p182 = scmp.eq.s32.totalorder %s18, 1
    %p183 = por %p181, %p182
    %p185 = scmp.ne.s32.totalorder %s170, %s184
    %p186 = scmp.eq.s32.totalorder %s18, 0
    %p187 = por %p185, %p186
    %s188 = ssub.s32 %s19, %s31
    %s189 = ssub.s32 %s20, %s27
    %s190 = sor.u32 %s188, %s189
    %p191 = scmp.eq.s32.totalorder %s190, 0
    %s193 = sadd.s32 %s192, 1
    %s194 = scalar_select %p191, %s192, %s193
    %p197 = pneg %p191
    %p198 = scmp.eq.s32.totalorder %s12, 1
    %p199 = por %p197, %p198
    %p200 = scmp.ne.s32.totalorder %s192, %s195
    %p201 = scmp.eq.s32.totalorder %s12, 0
    %p202 = por %p200, %p201
    %p203 = scmp.ne.s32.totalorder %s192, %s195
    %p204 = scmp.eq.s32.totalorder %s17, 1
    %p205 = por %p203, %p204
    %p206 = scmp.ne.s32.totalorder %s195, %s196
    %p207 = scmp.eq.s32.totalorder %s17, 0
    %p208 = por %p206, %p207
    %p209 = scmp.ne.s32.totalorder %s195, %s196
    %p210 = scmp.eq.s32.totalorder %s18, 1
    %p211 = por %p209, %p210
    %p213 = scmp.ne.s32.totalorder %s196, %s212
    %p214 = scmp.eq.s32.totalorder %s18, 0
    %p215 = por %p213, %p214
    %p216 = scmp.le.s32.totalorder 1, %s12
    %p217 = scmp.lt.s32.totalorder %s12, 3
    %p218 = pnand %p216, %p217
    %p219 = pneg %p218
    // Predicated region
    $region9: #{_lambda_.1} parent=5 // pred_check
      _
    $region10: #{_lambda_.1} parent=5 // pred_check_branch
      %221 = sbr.rel (%p218) target = $region12
    $region11: #{_lambda_.1} parent=5 // pred_region
      %s222 = ssub.s32 %s12, 1
      // Predicated region
      $region13: #{_lambda_.1} parent=11 // pred_check
        %p223 = pneg %p50
      $region14: #{_lambda_.1} parent=11 // pred_check_branch
        %225 = sbr.rel (%p223) target = $region16
      $region15: #{_lambda_.1} parent=11 // pred_region
        %s226 = smul.u32 2, %s22
        %p227 = scmp.lt.s32.totalorder %s226, 1
        %s228 = scalar_select %p227, %s226, 1
        %s229 = scalar_lea.vmem %s0, %s228
        %s230 = smul.u32 2, %s22
      $region16: #{_lambda_.1} parent=11 // pred_fallthru
        _
      // Predicated region
      $region17: #{_lambda_.1} parent=11 // pred_check
        %p231 = pneg %p159
      $region18: #{_lambda_.1} parent=11 // pred_check_branch
        %233 = sbr.rel (%p231) target = $region20
      $region19: #{_lambda_.1} parent=11 // pred_region
        _
      $region20: #{_lambda_.1} parent=11 // pred_fallthru
        _
      // Predicated region
      $region21: #{_lambda_.1} parent=11 // pred_check
        %p234 = pneg %p180
      $region22: #{_lambda_.1} parent=11 // pred_check_branch
        %236 = sbr.rel (%p234) target = $region24
      $region23: #{_lambda_.1} parent=11 // pred_region
        _
      $region24: #{_lambda_.1} parent=11 // pred_fallthru
        _
    $region12: #{_lambda_.1} parent=5 // pred_fallthru
      _
    %p237 = scmp.lt.s32.totalorder %s12, 2
    // Predicated region
    $region25: #{_lambda_.1} parent=5 // pred_check
      %p238 = pneg %p237
    $region26: #{_lambda_.1} parent=5 // pred_check_branch
      %240 = sbr.rel (%p238) target = $region28
    $region27: #{_lambda_.1} parent=5 // pred_region
      // Predicated region
      $region29: #{_lambda_.1} parent=27 // pred_check
        %p241 = pneg %p72
      $region30: #{_lambda_.1} parent=27 // pred_check_branch
        %243 = sbr.rel (%p241) target = $region32
      $region31: #{_lambda_.1} parent=27 // pred_region
        %s244 = smul.u32 2, %s20
        %p245 = scmp.lt.s32.totalorder %s19, 1
        %s246 = scalar_select %p245, %s19, 1
        %p247 = scmp.lt.s32.totalorder %s244, 5
        %s248 = scalar_select %p247, %s244, 5
        %s249 = smul.addr %s246, 6
        %s250 = sadd.s32 %s248, %s249
        %s251 = smul.addr %s250, 4
        %s252 = scalar_lea.vmem %s1, %s251
        %s253 = smul.u32 2, %s20
      $region32: #{_lambda_.1} parent=27 // pred_fallthru
        _
      // Predicated region
      $region33: #{_lambda_.1} parent=27 // pred_check
        %p254 = pneg %p102
      $region34: #{_lambda_.1} parent=27 // pred_check_branch
        %256 = sbr.rel (%p254) target = $region36
      $region35: #{_lambda_.1} parent=27 // pred_region
        %s257 = sadd.s32 %s20, 1
        %s258 = smul.u32 2, %s257
        %p259 = scmp.lt.s32.totalorder %s19, 1
        %s260 = scalar_select %p259, %s19, 1
        %p261 = scmp.lt.s32.totalorder %s258, 5
        %s262 = scalar_select %p261, %s258, 5
        %s263 = smul.addr %s260, 6
        %s264 = sadd.s32 %s262, %s263
        %s265 = smul.addr %s264, 4
        %s266 = scalar_lea.vmem %s2, %s265
        %s267 = sadd.s32 %s20, 1
        %s268 = smul.u32 2, %s267
      $region36: #{_lambda_.1} parent=27 // pred_fallthru
        _
      // Predicated region
      $region37: #{_lambda_.1} parent=27 // pred_check
        %p269 = pneg %p132
      $region38: #{_lambda_.1} parent=27 // pred_check_branch
        %271 = sbr.rel (%p269) target = $region40
      $region39: #{_lambda_.1} parent=27 // pred_region
        %s272 = sadd.s32 %s20, 2
        %s273 = smul.u32 2, %s272
        %p274 = scmp.lt.s32.totalorder %s19, 1
        %s275 = scalar_select %p274, %s19, 1
        %p276 = scmp.lt.s32.totalorder %s273, 5
        %s277 = scalar_select %p276, %s273, 5
        %s278 = smul.addr %s275, 6
        %s279 = sadd.s32 %s277, %s278
        %s280 = smul.addr %s279, 4
        %s281 = scalar_lea.vmem %s3, %s280
        %s282 = sadd.s32 %s20, 2
        %s283 = smul.u32 2, %s282
      $region40: #{_lambda_.1} parent=27 // pred_fallthru
        _
    $region28: #{_lambda_.1} parent=5 // pred_fallthru
      _
    %p284 = scmp.le.s32.totalorder 1, %s12
    %p285 = scmp.lt.s32.totalorder %s12, 3
    %p286 = pnand %p284, %p285
    %p287 = pneg %p286
    // Predicated region
    $region41: #{_lambda_.1} parent=5 // pred_check
      _
    $region42: #{_lambda_.1} parent=5 // pred_check_branch
      %289 = sbr.rel (%p286) target = $region44
    $region43: #{_lambda_.1} parent=5 // pred_region
      %s290 = ssub.s32 %s12, 1
      %s291 = smul.u32 2, %s22
      %p292 = scmp.lt.s32.totalorder %s291, 1
      %s293 = scalar_select %p292, %s291, 1
      %s294 = scalar_lea.vmem %s0, %s293
      %p295 = pneg %p50
      %p296 = pneg %p47
      %s297 = smul.u32 2, %s22
      %p298 = scmp.lt.s32.totalorder %s21, 1
      %s299 = scalar_select %p298, %s21, 1
      %p300 = scmp.lt.s32.totalorder %s297, 5
      %s301 = scalar_select %p300, %s297, 5
      %s302 = smul.addr %s299, 6
      %s303 = sadd.s32 %s301, %s302
      %s304 = smul.addr %s303, 4
      %s305 = scalar_lea.vmem %s1, %s304
      %p306 = pneg %p78
      %p307 = pneg %p75
      %s308 = sadd.s32 %s22, 1
      %s309 = smul.u32 2, %s308
      %p310 = scmp.lt.s32.totalorder %s21, 1
      %s311 = scalar_select %p310, %s21, 1
      %p312 = scmp.lt.s32.totalorder %s309, 5
      %s313 = scalar_select %p312, %s309, 5
      %s314 = smul.addr %s311, 6
      %s315 = sadd.s32 %s313, %s314
      %s316 = smul.addr %s315, 4
      %s317 = scalar_lea.vmem %s2, %s316
      %p318 = pneg %p108
      %p319 = pneg %p105
      %s320 = sadd.s32 %s22, 2
      %s321 = smul.u32 2, %s320
      %p322 = scmp.lt.s32.totalorder %s21, 1
      %s323 = scalar_select %p322, %s21, 1
      %p324 = scmp.lt.s32.totalorder %s321, 5
      %s325 = scalar_select %p324, %s321, 5
      %s326 = smul.addr %s323, 6
      %s327 = sadd.s32 %s325, %s326
      %s328 = smul.addr %s327, 4
      %s329 = scalar_lea.vmem %s3, %s328
      %p330 = pneg %p138
      %p331 = pneg %p135
      %p332 = pneg %p159
      %p333 = pneg %p156
      %p334 = pneg %p180
      %p335 = pneg %p177
      %p336 = pneg %p208
      %p337 = pneg %p205
      %s338 = smul.u32 2, %s22
      %p339 = scmp.lt.s32.totalorder %s21, 1
      %s340 = scalar_select %p339, %s21, 1
      %p341 = scmp.lt.s32.totalorder %s338, 1
      %s342 = scalar_select %p341, %s338, 1
      %s343 = smul.addr %s340, 24
      %s344 = sadd.s32 %s342, %s343
      %s345 = smul.addr %s344, 8
      %s346 = scalar_lea.vmem %s6, %s345
      %s347 = smul.u32 2, %s22
      %p348 = scmp.lt.s32.totalorder %s347, 1
      %s349 = scalar_select %p348, %s347, 1
      %s350 = scalar_lea.vmem %s0, %s349
      %s351 = smul.u32 2, %s22
      %s352 = smul.u32 2, %s22
      %p353 = scmp.lt.s32.totalorder %s21, 1
      %s354 = scalar_select %p353, %s21, 1
      %p355 = scmp.lt.s32.totalorder %s352, 5
      %s356 = scalar_select %p355, %s352, 5
      %s357 = smul.addr %s354, 6
      %s358 = sadd.s32 %s356, %s357
      %s359 = smul.addr %s358, 4
      %s360 = scalar_lea.vmem %s1, %s359
      %s361 = smul.u32 2, %s22
      %s362 = sadd.s32 %s22, 1
      %s363 = smul.u32 2, %s362
      %p364 = scmp.lt.s32.totalorder %s21, 1
      %s365 = scalar_select %p364, %s21, 1
      %p366 = scmp.lt.s32.totalorder %s363, 5
      %s367 = scalar_select %p366, %s363, 5
      %s368 = smul.addr %s365, 6
      %s369 = sadd.s32 %s367, %s368
      %s370 = smul.addr %s369, 4
      %s371 = scalar_lea.vmem %s2, %s370
      %s372 = sadd.s32 %s22, 1
      %s373 = smul.u32 2, %s372
      %s374 = sadd.s32 %s22, 2
      %s375 = smul.u32 2, %s374
      %p376 = scmp.lt.s32.totalorder %s21, 1
      %s377 = scalar_select %p376, %s21, 1
      %p378 = scmp.lt.s32.totalorder %s375, 5
      %s379 = scalar_select %p378, %s375, 5
      %s380 = smul.addr %s377, 6
      %s381 = sadd.s32 %s379, %s380
      %s382 = smul.addr %s381, 4
      %s383 = scalar_lea.vmem %s3, %s382
      %s384 = sadd.s32 %s22, 2
      %s385 = smul.u32 2, %s384
      %s386 = smul.u32 2, %s22
      %p387 = scmp.lt.s32.totalorder %s21, 1
      %s388 = scalar_select %p387, %s21, 1
      %p389 = scmp.lt.s32.totalorder %s386, 1
      %s390 = scalar_select %p389, %s386, 1
      %s391 = smul.addr %s388, 24
      %s392 = sadd.s32 %s390, %s391
      %s393 = smul.addr %s392, 8
      %s394 = scalar_lea.vmem %s6, %s393
      %s395 = smul.u32 2, %s22
      %v397 = vld [vmem:[%s360] sm:$0xff]
      %v398 = vld [vmem:[%s371] sm:$0xff]
      %v399 = vld [vmem:[%s383] sm:$0xff]
      %v401 = vunpack.c.h.b16 %v397
      %v402 = vpack.c.b16 %v401, %v401
      %v405 = vunpack.c.l.b16 %v398
      %v406 = vunpack.c.h.b16 %v398
      %v407 = vpack.c.b16 %v405, %v405
      %v408 = vpack.c.b16 %v406, %v406
      %v412 = vunpack.c.l.b16 %v399
      %v413 = vpack.c.b16 %v412, %v412
      %v415 = vunpack.c.l.bf16 %v402
      %v416 = vunpack.c.l.bf16 %v407
      %v417 = vunpack.c.l.bf16 %v408
      %v418 = vunpack.c.l.bf16 %v413
      %v419 = vld [vmem:[%s350] sm:$0x3]
      %vm420 = vcmp.ge.s32.totalorder %v419, 1
      %vm421 = vcmp.lt.s32.totalorder %v419, 15
      %vm422 = vcmp.ge.s32.totalorder %v419, 2
      %vm423 = vcmp.lt.s32.totalorder %v419, 14
      %vm424 = vcmp.ge.s32.totalorder %v419, 4
      %vm425 = vcmp.lt.s32.totalorder %v419, 12
      %v426 = vsel %vm420, 1, 0
      %v427 = vperm.slane %v426, 0
      %v428 = vperm.slane %v426, 1
      %vm429 = vcmp.eq.s32.totalorder %v427, 1
      %vm430 = vcmp.eq.s32.totalorder %v428, 1
      %434 = vrot.lane.b32.xlu0 %v415, 17
      %v435 = vpop.permute.xlu0 %434
      %436 = vrot.lane.b32.xlu0 %v416, 17
      %v437 = vpop.permute.xlu0 %436
      %438 = vrot.lane.b32.xlu0 %v417, 17
      %v439 = vpop.permute.xlu0 %438
      %vm440 = vcmask 138240
      %v441 = vsel %vm440, %v435, %v437
      %v442 = vsel %vm440, %v437, %v439
      %v445 = vsel %vm429, %v441, 0.0
      %v446 = vsel %vm430, %v442, 0.0
      %v447 = vsel %vm421, 1, 0
      %v448 = vperm.slane %v447, 0
      %v449 = vperm.slane %v447, 1
      %vm450 = vcmp.eq.s32.totalorder %v448, 1
      %vm451 = vcmp.eq.s32.totalorder %v449, 1
      %452 = vrot.lane.b32.xlu0 %v415, 15
      %v453 = vpop.permute.xlu0 %452
      %454 = vrot.lane.b32.xlu0 %v416, 15
      %v455 = vpop.permute.xlu0 %454
      %456 = vrot.lane.b32.xlu0 %v417, 15
      %v457 = vpop.permute.xlu0 %456
      %vm458 = vcmask 121856
      %v459 = vsel %vm458, %v453, %v455
      %v460 = vsel %vm458, %v455, %v457
      %v463 = vsel %vm450, %v459, 0.0
      %v464 = vsel %vm451, %v460, 0.0
      %465 = vrot.lane.b32.xlu0 %v415, 1
      %v466 = vpop.permute.xlu0 %465
      %467 = vrot.lane.b32.xlu0 %v416, 1
      %v468 = vpop.permute.xlu0 %467
      %469 = vrot.lane.b32.xlu0 %v417, 1
      %v470 = vpop.permute.xlu0 %469
      %vm471 = vcmask 7168
      %v472 = vsel %vm471, %v466, %v468
      %v473 = vsel %vm471, %v468, %v470
      %v476 = vsel %vm429, %v472, 0.0
      %v477 = vsel %vm430, %v473, 0.0
      %479 = vrot.lane.b32.xlu0 %v416, 127
      %v480 = vpop.permute.xlu0 %479
      %481 = vrot.lane.b32.xlu0 %v417, 127
      %v482 = vpop.permute.xlu0 %481
      %483 = vrot.lane.b32.xlu0 %v418, 127
      %v484 = vpop.permute.xlu0 %483
      %vm485 = vcmask 1039360
      %v486 = vsel %vm485, %v480, %v482
      %v487 = vsel %vm485, %v482, %v484
      %v490 = vsel %vm450, %v486, 0.0
      %v491 = vsel %vm451, %v487, 0.0
      %492 = vrot.lane.b32.xlu0 %v416, 113
      %v493 = vpop.permute.xlu0 %492
      %494 = vrot.lane.b32.xlu0 %v417, 113
      %v495 = vpop.permute.xlu0 %494
      %496 = vrot.lane.b32.xlu0 %v418, 113
      %v497 = vpop.permute.xlu0 %496
      %vm498 = vcmask 924672
      %v499 = vsel %vm498, %v493, %v495
      %v500 = vsel %vm498, %v495, %v497
      %v503 = vsel %vm429, %v499, 0.0
      %v504 = vsel %vm430, %v500, 0.0
      %505 = vrot.lane.b32.xlu0 %v416, 111
      %v506 = vpop.permute.xlu0 %505
      %507 = vrot.lane.b32.xlu0 %v417, 111
      %v508 = vpop.permute.xlu0 %507
      %509 = vrot.lane.b32.xlu0 %v418, 111
      %v510 = vpop.permute.xlu0 %509
      %vm511 = vcmask 908288
      %v512 = vsel %vm511, %v506, %v508
      %v513 = vsel %vm511, %v508, %v510
      %v516 = vsel %vm450, %v512, 0.0
      %v517 = vsel %vm451, %v513, 0.0
      %v518 = vsel %vm422, 1, 0
      %v519 = vperm.slane %v518, 0
      %v520 = vperm.slane %v518, 1
      %vm521 = vcmp.eq.s32.totalorder %v519, 1
      %vm522 = vcmp.eq.s32.totalorder %v520, 1
      %523 = vrot.lane.b32.xlu0 %v415, 34
      %v524 = vpop.permute.xlu0 %523
      %525 = vrot.lane.b32.xlu0 %v416, 34
      %v526 = vpop.permute.xlu0 %525
      %527 = vrot.lane.b32.xlu0 %v417, 34
      %v528 = vpop.permute.xlu0 %527
      %vm529 = vcmask 277504
      %v530 = vsel %vm529, %v524, %v526
      %v531 = vsel %vm529, %v526, %v528
      %v534 = vsel %vm521, %v530, 0.0
      %v535 = vsel %vm522, %v531, 0.0
      %v536 = vsel %vm423, 1, 0
      %v537 = vperm.slane %v536, 0
      %v538 = vperm.slane %v536, 1
      %vm539 = vcmp.eq.s32.totalorder %v537, 1
      %vm540 = vcmp.eq.s32.totalorder %v538, 1
      %541 = vrot.lane.b32.xlu0 %v415, 30
      %v542 = vpop.permute.xlu0 %541
      %543 = vrot.lane.b32.xlu0 %v416, 30
      %v544 = vpop.permute.xlu0 %543
      %545 = vrot.lane.b32.xlu0 %v417, 30
      %v546 = vpop.permute.xlu0 %545
      %vm547 = vcmask 244736
      %v548 = vsel %vm547, %v542, %v544
      %v549 = vsel %vm547, %v544, %v546
      %v552 = vsel %vm539, %v548, 0.0
      %v553 = vsel %vm540, %v549, 0.0
      %554 = vrot.lane.b32.xlu0 %v415, 2
      %v555 = vpop.permute.xlu0 %554
      %556 = vrot.lane.b32.xlu0 %v416, 2
      %v557 = vpop.permute.xlu0 %556
      %558 = vrot.lane.b32.xlu0 %v417, 2
      %v559 = vpop.permute.xlu0 %558
      %vm560 = vcmask 15360
      %v561 = vsel %vm560, %v555, %v557
      %v562 = vsel %vm560, %v557, %v559
      %v565 = vsel %vm521, %v561, 0.0
      %v566 = vsel %vm522, %v562, 0.0
      %567 = vrot.lane.b32.xlu0 %v416, 126
      %v568 = vpop.permute.xlu0 %567
      %569 = vrot.lane.b32.xlu0 %v417, 126
      %v570 = vpop.permute.xlu0 %569
      %571 = vrot.lane.b32.xlu0 %v418, 126
      %v572 = vpop.permute.xlu0 %571
      %vm573 = vcmask 1031168
      %v574 = vsel %vm573, %v568, %v570
      %v575 = vsel %vm573, %v570, %v572
      %v578 = vsel %vm539, %v574, 0.0
      %v579 = vsel %vm540, %v575, 0.0
      %580 = vrot.lane.b32.xlu0 %v416, 98
      %v581 = vpop.permute.xlu0 %580
      %582 = vrot.lane.b32.xlu0 %v417, 98
      %v583 = vpop.permute.xlu0 %582
      %584 = vrot.lane.b32.xlu0 %v418, 98
      %v585 = vpop.permute.xlu0 %584
      %vm586 = vcmask 801792
      %v587 = vsel %vm586, %v581, %v583
      %v588 = vsel %vm586, %v583, %v585
      %v591 = vsel %vm521, %v587, 0.0
      %v592 = vsel %vm522, %v588, 0.0
      %593 = vrot.lane.b32.xlu0 %v416, 94
      %v594 = vpop.permute.xlu0 %593
      %595 = vrot.lane.b32.xlu0 %v417, 94
      %v596 = vpop.permute.xlu0 %595
      %597 = vrot.lane.b32.xlu0 %v418, 94
      %v598 = vpop.permute.xlu0 %597
      %vm599 = vcmask 769024
      %v600 = vsel %vm599, %v594, %v596
      %v601 = vsel %vm599, %v596, %v598
      %v604 = vsel %vm539, %v600, 0.0
      %v605 = vsel %vm540, %v601, 0.0
      %v606 = vsel %vm424, 1, 0
      %v607 = vperm.slane %v606, 0
      %v608 = vperm.slane %v606, 1
      %vm609 = vcmp.eq.s32.totalorder %v607, 1
      %vm610 = vcmp.eq.s32.totalorder %v608, 1
      %611 = vrot.lane.b32.xlu0 %v415, 68
      %v612 = vpop.permute.xlu0 %611
      %613 = vrot.lane.b32.xlu0 %v416, 68
      %v614 = vpop.permute.xlu0 %613
      %615 = vrot.lane.b32.xlu0 %v417, 68
      %v616 = vpop.permute.xlu0 %615
      %vm617 = vcmask 556032
      %v618 = vsel %vm617, %v612, %v614
      %v619 = vsel %vm617, %v614, %v616
      %v622 = vsel %vm609, %v618, 0.0
      %v623 = vsel %vm610, %v619, 0.0
      %v624 = vsel %vm425, 1, 0
      %v625 = vperm.slane %v624, 0
      %v626 = vperm.slane %v624, 1
      %vm627 = vcmp.eq.s32.totalorder %v625, 1
      %vm628 = vcmp.eq.s32.totalorder %v626, 1
      %629 = vrot.lane.b32.xlu0 %v415, 60
      %v630 = vpop.permute.xlu0 %629
      %631 = vrot.lane.b32.xlu0 %v416, 60
      %v632 = vpop.permute.xlu0 %631
      %633 = vrot.lane.b32.xlu0 %v417, 60
      %v634 = vpop.permute.xlu0 %633
      %vm635 = vcmask 490496
      %v636 = vsel %vm635, %v630, %v632
      %v637 = vsel %vm635, %v632, %v634
      %v640 = vsel %vm627, %v636, 0.0
      %v641 = vsel %vm628, %v637, 0.0
      %642 = vrot.lane.b32.xlu0 %v415, 4
      %v643 = vpop.permute.xlu0 %642
      %644 = vrot.lane.b32.xlu0 %v416, 4
      %v645 = vpop.permute.xlu0 %644
      %646 = vrot.lane.b32.xlu0 %v417, 4
      %v647 = vpop.permute.xlu0 %646
      %vm648 = vcmask 31744
      %v649 = vsel %vm648, %v643, %v645
      %v650 = vsel %vm648, %v645, %v647
      %v653 = vsel %vm609, %v649, 0.0
      %v654 = vsel %vm610, %v650, 0.0
      %655 = vrot.lane.b32.xlu0 %v416, 124
      %v656 = vpop.permute.xlu0 %655
      %657 = vrot.lane.b32.xlu0 %v417, 124
      %v658 = vpop.permute.xlu0 %657
      %659 = vrot.lane.b32.xlu0 %v418, 124
      %v660 = vpop.permute.xlu0 %659
      %vm661 = vcmask 1014784
      %v662 = vsel %vm661, %v656, %v658
      %v663 = vsel %vm661, %v658, %v660
      %v666 = vsel %vm627, %v662, 0.0
      %v667 = vsel %vm628, %v663, 0.0
      %668 = vrot.lane.b32.xlu0 %v418, 68
      %v669 = vpop.permute.xlu0 %668
      %v670 = vsel %vm617, %v616, %v669
      %v672 = vsel %vm609, %v619, 0.0
      %v673 = vsel %vm610, %v670, 0.0
      %674 = vrot.lane.b32.xlu0 %v418, 60
      %v675 = vpop.permute.xlu0 %674
      %v676 = vsel %vm635, %v634, %v675
      %v678 = vsel %vm627, %v637, 0.0
      %v679 = vsel %vm628, %v676, 0.0
      %680 = vrot.lane.b32.xlu0 %v415, 16
      %v681 = vpop.permute.xlu0 %680
      %682 = vrot.lane.b32.xlu0 %v416, 16
      %v683 = vpop.permute.xlu0 %682
      %684 = vrot.lane.b32.xlu0 %v417, 16
      %v685 = vpop.permute.xlu0 %684
      %vm686 = vcmask 130048
      %v687 = vsel %vm686, %v681, %v683
      %v688 = vsel %vm686, %v683, %v685
      %691 = vrot.lane.b32.xlu0 %v416, 112
      %v692 = vpop.permute.xlu0 %691
      %693 = vrot.lane.b32.xlu0 %v417, 112
      %v694 = vpop.permute.xlu0 %693
      %695 = vrot.lane.b32.xlu0 %v418, 112
      %v696 = vpop.permute.xlu0 %695
      %vm697 = vcmask 916480
      %v698 = vsel %vm697, %v692, %v694
      %v699 = vsel %vm697, %v694, %v696
      %702 = vrot.lane.b32.xlu0 %v415, 32
      %v703 = vpop.permute.xlu0 %702
      %704 = vrot.lane.b32.xlu0 %v416, 32
      %v705 = vpop.permute.xlu0 %704
      %706 = vrot.lane.b32.xlu0 %v417, 32
      %v707 = vpop.permute.xlu0 %706
      %vm708 = vcmask 261120
      %v709 = vsel %vm708, %v703, %v705
      %v710 = vsel %vm708, %v705, %v707
      %715 = vrot.lane.b32.xlu0 %v604, 32
      %v716 = vpop.permute.xlu0 %715
      %717 = vrot.lane.b32.xlu0 %v605, 32
      %v718 = vpop.permute.xlu0 %717
      %v719 = vsel %vm708, %v716, %v718
      %722 = vrot.lane.b32.xlu0 %v622, 32
      %v723 = vpop.permute.xlu0 %722
      %724 = vrot.lane.b32.xlu0 %v623, 32
      %v725 = vpop.permute.xlu0 %724
      %v726 = vsel %vm708, %v723, %v725
      %727 = vrot.lane.b32.xlu0 %v415, 96
      %v728 = vpop.permute.xlu0 %727
      %729 = vrot.lane.b32.xlu0 %v416, 96
      %v730 = vpop.permute.xlu0 %729
      %731 = vrot.lane.b32.xlu0 %v417, 96
      %v732 = vpop.permute.xlu0 %731
      %vm733 = vcmask 785408
      %v734 = vsel %vm733, %v728, %v730
      %v735 = vsel %vm733, %v730, %v732
      %738 = vrot.lane.b32.xlu0 %v640, 32
      %v739 = vpop.permute.xlu0 %738
      %740 = vrot.lane.b32.xlu0 %v641, 32
      %v741 = vpop.permute.xlu0 %740
      %v742 = vsel %vm708, %v739, %v741
      %745 = vrot.lane.b32.xlu0 %v653, 32
      %v746 = vpop.permute.xlu0 %745
      %747 = vrot.lane.b32.xlu0 %v654, 32
      %v748 = vpop.permute.xlu0 %747
      %v749 = vsel %vm708, %v746, %v748
      %752 = vrot.lane.b32.xlu0 %v666, 32
      %v753 = vpop.permute.xlu0 %752
      %754 = vrot.lane.b32.xlu0 %v667, 32
      %v755 = vpop.permute.xlu0 %754
      %v756 = vsel %vm708, %v753, %v755
      %759 = vrot.lane.b32.xlu0 %v672, 32
      %v760 = vpop.permute.xlu0 %759
      %761 = vrot.lane.b32.xlu0 %v673, 32
      %v762 = vpop.permute.xlu0 %761
      %v763 = vsel %vm708, %v760, %v762
      %764 = vrot.lane.b32.xlu0 %v418, 96
      %v765 = vpop.permute.xlu0 %764
      %v766 = vsel %vm733, %v732, %v765
      %769 = vrot.lane.b32.xlu0 %v678, 32
      %v770 = vpop.permute.xlu0 %769
      %771 = vrot.lane.b32.xlu0 %v679, 32
      %v772 = vpop.permute.xlu0 %771
      %v773 = vsel %vm708, %v770, %v772
      %774 = vrot.lane.b32.xlu0 %v716, 96
      %v775 = vpop.permute.xlu0 %774
      %776 = vrot.lane.b32.xlu0 %v719, 96
      %v777 = vpop.permute.xlu0 %776
      %778 = vrot.lane.b32.xlu0 %v718, 96
      %v779 = vpop.permute.xlu0 %778
      %780 = vrot.lane.b32.xlu0 %v723, 96
      %v781 = vpop.permute.xlu0 %780
      %782 = vrot.lane.b32.xlu0 %v726, 96
      %v783 = vpop.permute.xlu0 %782
      %784 = vrot.lane.b32.xlu0 %v725, 96
      %v785 = vpop.permute.xlu0 %784
      %786 = vrot.lane.b32.xlu0 %v734, 96
      %v787 = vpop.permute.xlu0 %786
      %788 = vrot.lane.b32.xlu0 %v735, 96
      %v789 = vpop.permute.xlu0 %788
      %790 = vrot.lane.b32.xlu0 %v732, 96
      %v791 = vpop.permute.xlu0 %790
      %792 = vrot.lane.b32.xlu0 %v739, 96
      %v793 = vpop.permute.xlu0 %792
      %794 = vrot.lane.b32.xlu0 %v742, 96
      %v795 = vpop.permute.xlu0 %794
      %796 = vrot.lane.b32.xlu0 %v741, 96
      %v797 = vpop.permute.xlu0 %796
      %798 = vrot.lane.b32.xlu0 %v746, 96
      %v799 = vpop.permute.xlu0 %798
      %800 = vrot.lane.b32.xlu0 %v749, 96
      %v801 = vpop.permute.xlu0 %800
      %802 = vrot.lane.b32.xlu0 %v748, 96
      %v803 = vpop.permute.xlu0 %802
      %804 = vrot.lane.b32.xlu0 %v705, 96
      %v805 = vpop.permute.xlu0 %804
      %806 = vrot.lane.b32.xlu0 %v710, 96
      %v807 = vpop.permute.xlu0 %806
      %808 = vrot.lane.b32.xlu0 %v707, 96
      %v809 = vpop.permute.xlu0 %808
      %810 = vrot.lane.b32.xlu0 %v753, 96
      %v811 = vpop.permute.xlu0 %810
      %812 = vrot.lane.b32.xlu0 %v756, 96
      %v813 = vpop.permute.xlu0 %812
      %814 = vrot.lane.b32.xlu0 %v755, 96
      %v815 = vpop.permute.xlu0 %814
      %816 = vrot.lane.b32.xlu0 %v760, 96
      %v817 = vpop.permute.xlu0 %816
      %818 = vrot.lane.b32.xlu0 %v763, 96
      %v819 = vpop.permute.xlu0 %818
      %820 = vrot.lane.b32.xlu0 %v762, 96
      %v821 = vpop.permute.xlu0 %820
      %822 = vrot.lane.b32.xlu0 %v766, 96
      %v823 = vpop.permute.xlu0 %822
      %824 = vrot.lane.b32.xlu0 %v765, 96
      %v825 = vpop.permute.xlu0 %824
      %826 = vrot.lane.b32.xlu0 %v770, 96
      %v827 = vpop.permute.xlu0 %826
      %828 = vrot.lane.b32.xlu0 %v773, 96
      %v829 = vpop.permute.xlu0 %828
      %830 = vrot.lane.b32.xlu0 %v772, 96
      %v831 = vpop.permute.xlu0 %830
      %v832 = vsel %vm733, %v775, %v777
      %v833 = vsel %vm733, %v777, %v779
      %v834 = vsel %vm733, %v781, %v783
      %v835 = vsel %vm733, %v783, %v785
      %v836 = vsel %vm733, %v787, %v789
      %v837 = vsel %vm733, %v789, %v791
      %v838 = vsel %vm733, %v793, %v795
      %v839 = vsel %vm733, %v795, %v797
      %v840 = vsel %vm733, %v799, %v801
      %v841 = vsel %vm733, %v801, %v803
      %v842 = vsel %vm733, %v805, %v807
      %v843 = vsel %vm733, %v807, %v809
      %v844 = vsel %vm733, %v811, %v813
      %v845 = vsel %vm733, %v813, %v815
      %v846 = vsel %vm733, %v817, %v819
      %v847 = vsel %vm733, %v819, %v821
      %v848 = vsel %vm733, %v789, %v823
      %v849 = vsel %vm733, %v823, %v825
      %v850 = vsel %vm733, %v827, %v829
      %v851 = vsel %vm733, %v829, %v831
      %v874 = vld [vmem:[%s4] sm:$0xff]
      %v875 = vld [vmem:[%s4 + $0x8] sm:$0xff]
      %v876 = vld [vmem:[%s4 + $0x10] sm:$0xff]
      %v877 = vld [vmem:[%s4 + $0x18] sm:$0xff]
      %v878 = vld [vmem:[%s4 + $0x20] sm:$0xff]
      %v879 = vld [vmem:[%s4 + $0x28] sm:$0xff]
      %v880 = vld [vmem:[%s4 + $0x30] sm:$0xff]
      %v881 = vld [vmem:[%s4 + $0x38] sm:$0xff]
      %v882 = vld [vmem:[%s4 + $0x40] sm:$0xff]
      %v883 = vld [vmem:[%s4 + $0x48] sm:$0xff]
      %v884 = vld [vmem:[%s4 + $0x50] sm:$0xff]
      %v885 = vld [vmem:[%s4 + $0x58] sm:$0x11]
      %v886 = vpack.c.bf16 %v687, %v445
      %v887 = vpack.c.bf16 %v688, %v446
      %v888 = vpack.c.bf16 %v476, %v463
      %v889 = vpack.c.bf16 %v477, %v464
      %v890 = vpack.c.bf16 %v490, %v416
      %v891 = vpack.c.bf16 %v491, %v417
      %v892 = vpack.c.bf16 %v698, %v503
      %v893 = vpack.c.bf16 %v699, %v504
      %v894 = vpack.c.bf16 %v534, %v516
      %v895 = vpack.c.bf16 %v535, %v517
      %v896 = vpack.c.bf16 %v552, %v709
      %v897 = vpack.c.bf16 %v553, %v710
      %v898 = vpack.c.bf16 %v416, %v565
      %v899 = vpack.c.bf16 %v417, %v566
      %v900 = vpack.c.bf16 %v591, %v578
      %v901 = vpack.c.bf16 %v592, %v579
      %v902 = vpack.c.bf16 %v832, %v735
      %v903 = vpack.c.bf16 %v833, %v766
      %v904 = vpack.c.bf16 %v836, %v834
      %v905 = vpack.c.bf16 %v837, %v835
      %v906 = vpack.c.bf16 %v840, %v838
      %v907 = vpack.c.bf16 %v841, %v839
      %v908 = vpack.c.bf16 %v844, %v842
      %v909 = vpack.c.bf16 %v845, %v843
      %v910 = vpack.c.bf16 %v848, %v846
      %v911 = vpack.c.bf16 %v849, %v847
      %v912 = vpack.c.bf16 %v850, %v850
      %v913 = vpack.c.bf16 %v851, %v851
      %v914 = vld [vmem:[%s5] sm:$0xff]
      %v915 = vld [vmem:[%s5 + $0x8] sm:$0xff]
      %v916 = vld [vmem:[%s5 + $0x10] sm:$0xff]
      %v917 = vld [vmem:[%s5 + $0x18] sm:$0xff]
      %v918 = vld [vmem:[%s5 + $0x20] sm:$0xff]
      %v919 = vld [vmem:[%s5 + $0x28] sm:$0xff]
      %v920 = vld [vmem:[%s5 + $0x30] sm:$0xff]
      %v921 = vld [vmem:[%s5 + $0x38] sm:$0xff]
      %v922 = vld [vmem:[%s5 + $0x40] sm:$0xff]
      %v923 = vld [vmem:[%s5 + $0x48] sm:$0xff]
      %v924 = vld [vmem:[%s5 + $0x50] sm:$0xff]
      %v925 = vld [vmem:[%s5 + $0x58] sm:$0x3]
      %927 = vset.pattern.permute.xlu0 0
      %928 = vperm.xlu0 %927, %v914
      %v929 = vpop.permute.xlu0 %928
      %932 = vset.pattern.permute.xlu0 0
      %933 = vperm.xlu0 %932, %v915
      %v934 = vpop.permute.xlu0 %933
      %937 = vset.pattern.permute.xlu0 0
      %938 = vperm.xlu0 %937, %v916
      %v939 = vpop.permute.xlu0 %938
      %942 = vset.pattern.permute.xlu0 0
      %943 = vperm.xlu0 %942, %v917
      %v944 = vpop.permute.xlu0 %943
      %947 = vset.pattern.permute.xlu0 0
      %948 = vperm.xlu0 %947, %v918
      %v949 = vpop.permute.xlu0 %948
      %952 = vset.pattern.permute.xlu0 0
      %953 = vperm.xlu0 %952, %v919
      %v954 = vpop.permute.xlu0 %953
      %957 = vset.pattern.permute.xlu0 0
      %958 = vperm.xlu0 %957, %v920
      %v959 = vpop.permute.xlu0 %958
      %962 = vset.pattern.permute.xlu0 0
      %963 = vperm.xlu0 %962, %v921
      %v964 = vpop.permute.xlu0 %963
      %967 = vset.pattern.permute.xlu0 0
      %968 = vperm.xlu0 %967, %v922
      %v969 = vpop.permute.xlu0 %968
      %972 = vset.pattern.permute.xlu0 0
      %973 = vperm.xlu0 %972, %v923
      %v974 = vpop.permute.xlu0 %973
      %977 = vset.pattern.permute.xlu0 0
      %978 = vperm.xlu0 %977, %v924
      %v979 = vpop.permute.xlu0 %978
      %982 = vset.pattern.permute.xlu0 0
      %983 = vperm.xlu0 %982, %v925
      %v984 = vpop.permute.xlu0 %983
      %v998 = vunpack.c.l.b16 %v874
      %v999 = vunpack.c.h.b16 %v874
      %v1000 = vunpack.c.l.b16 %v875
      %v1001 = vunpack.c.h.b16 %v875
      %v1002 = vunpack.c.l.b16 %v876
      %v1003 = vunpack.c.h.b16 %v876
      %v1004 = vunpack.c.l.b16 %v877
      %v1005 = vunpack.c.h.b16 %v877
      %v1006 = vunpack.c.l.b16 %v878
      %v1007 = vunpack.c.h.b16 %v878
      %v1008 = vunpack.c.l.b16 %v879
      %v1009 = vunpack.c.h.b16 %v879
      %v1010 = vunpack.c.l.b16 %v880
      %v1011 = vunpack.c.h.b16 %v880
      %v1012 = vunpack.c.l.b16 %v881
      %v1013 = vunpack.c.h.b16 %v881
      %v1014 = vunpack.c.l.b16 %v882
      %v1015 = vunpack.c.h.b16 %v882
      %v1016 = vunpack.c.l.b16 %v883
      %v1017 = vunpack.c.h.b16 %v883
      %v1018 = vunpack.c.l.b16 %v884
      %v1019 = vunpack.c.h.b16 %v884
      %v1020 = vunpack.c.l.b16 %v885
      %v1021 = vunpack.c.h.b16 %v885
      %v1022 = vpack.c.b16 %v1000, %v998
      %v1023 = vpack.c.b16 %v1001, %v999
      %v1024 = vpack.c.b16 %v1004, %v1002
      %v1025 = vpack.c.b16 %v1005, %v1003
      %v1026 = vpack.c.b16 %v1008, %v1006
      %v1027 = vpack.c.b16 %v1009, %v1007
      %v1028 = vpack.c.b16 %v1012, %v1010
      %v1029 = vpack.c.b16 %v1013, %v1011
      %v1030 = vpack.c.b16 %v1016, %v1014
      %v1031 = vpack.c.b16 %v1017, %v1015
      %v1032 = vpack.c.b16 %v1020, %v1018
      %v1033 = vpack.c.b16 %v1021, %v1019
      %vm1040 = vcmask 719872
      %v1042 = vsel %vm1040, %v1023, 0
      %v1045 = vsel %vm1040, %v1025, 0
      %v1048 = vsel %vm1040, %v1027, 0
      %v1051 = vsel %vm1040, %v1029, 0
      %v1054 = vsel %vm1040, %v1031, 0
      %v1057 = vsel %vm1040, %v1033, 0
      %vm1059 = vcmask 1043456
      %v1061 = vsel %vm1059, %v912, 0
      %v1064 = vsel %vm1059, %v913, 0
      %1066 = vmatpush.bf16.msra.mxu0 %v900
      %1067 = vmatpush.bf16.msra.mxu0 %v898
      %1068 = vmatpush.bf16.msra.mxu0 %v896
      %1069 = vmatpush.bf16.msra.mxu0 %v894
      %1070 = vmatpush.bf16.msra.mxu0 %v892
      %1071 = vmatpush.bf16.msra.mxu0 %v890
      %1072 = vmatpush.bf16.msra.mxu0 %v888
      %1073 = vmatpush.bf16.msra.mxu0 %v886
      %1074 = vmatmul.bf16.gmra.mxu0 %v1022
      %v1075 = vpop.f32.mrf.mxu0
      %v1076 = vadd.f32 %v929, %v1075
      %v1077 = vpop.f32.mrf.mxu0
      %v1078 = vadd.f32 %v934, %v1077
      %1079 = vmatmul.bf16.gmra.mxu0 %v1024
      %v1080 = vpop.f32.mrf.mxu0
      %v1081 = vadd.f32 %v939, %v1080
      %v1082 = vpop.f32.mrf.mxu0
      %v1083 = vadd.f32 %v944, %v1082
      %1084 = vmatmul.bf16.gmra.mxu0 %v1026
      %v1085 = vpop.f32.mrf.mxu0
      %v1086 = vadd.f32 %v949, %v1085
      %v1087 = vpop.f32.mrf.mxu0
      %v1088 = vadd.f32 %v954, %v1087
      %1089 = vmatmul.bf16.gmra.mxu0 %v1028
      %v1090 = vpop.f32.mrf.mxu0
      %v1091 = vadd.f32 %v959, %v1090
      %v1092 = vpop.f32.mrf.mxu0
      %v1093 = vadd.f32 %v964, %v1092
      %1094 = vmatmul.bf16.gmra.mxu0 %v1030
      %v1095 = vpop.f32.mrf.mxu0
      %v1096 = vadd.f32 %v969, %v1095
      %v1097 = vpop.f32.mrf.mxu0
      %v1098 = vadd.f32 %v974, %v1097
      %1099 = vmatmul.bf16.gmra.mxu0 %v1032
      %v1100 = vpop.f32.mrf.mxu0
      %v1101 = vadd.f32 %v979, %v1100
      %v1102 = vpop.f32.mrf.mxu0
      %v1103 = vadd.f32 %v984, %v1102
      %1104 = vdwg.mxu0
      %1105 = vmatpush.bf16.msra.mxu0 0
      %1106 = vmatpush.bf16.msra.mxu0 0
      %1107 = vmatpush.bf16.msra.mxu0 %v1061
      %1108 = vmatpush.bf16.msra.mxu0 %v910
      %1109 = vmatpush.bf16.msra.mxu0 %v908
      %1110 = vmatpush.bf16.msra.mxu0 %v906
      %1111 = vmatpush.bf16.msra.mxu0 %v904
      %1112 = vmatpush.bf16.msra.mxu0 %v902
      %1113 = vmatmul.bf16.gmra.mxu0 %v1042
      %v1114 = vpop.f32.mrf.mxu0
      %v1115 = vadd.f32 %v1076, %v1114
      %v1116 = vpop.f32.mrf.mxu0
      %v1117 = vadd.f32 %v1078, %v1116
      %1118 = vmatmul.bf16.gmra.mxu0 %v1045
      %v1119 = vpop.f32.mrf.mxu0
      %v1120 = vadd.f32 %v1081, %v1119
      %v1121 = vpop.f32.mrf.mxu0
      %v1122 = vadd.f32 %v1083, %v1121
      %1123 = vmatmul.bf16.gmra.mxu0 %v1048
      %v1124 = vpop.f32.mrf.mxu0
      %v1125 = vadd.f32 %v1086, %v1124
      %v1126 = vpop.f32.mrf.mxu0
      %v1127 = vadd.f32 %v1088, %v1126
      %1128 = vmatmul.bf16.gmra.mxu0 %v1051
      %v1129 = vpop.f32.mrf.mxu0
      %v1130 = vadd.f32 %v1091, %v1129
      %v1131 = vpop.f32.mrf.mxu0
      %v1132 = vadd.f32 %v1093, %v1131
      %1133 = vmatmul.bf16.gmra.mxu0 %v1054
      %v1134 = vpop.f32.mrf.mxu0
      %v1135 = vadd.f32 %v1096, %v1134
      %v1136 = vpop.f32.mrf.mxu0
      %v1137 = vadd.f32 %v1098, %v1136
      %1138 = vmatmul.bf16.gmra.mxu0 %v1057
      %v1139 = vpop.f32.mrf.mxu0
      %v1140 = vadd.f32 %v1101, %v1139
      %v1141 = vpop.f32.mrf.mxu0
      %v1142 = vadd.f32 %v1103, %v1141
      %1143 = vdwg.mxu0
      %1144 = vmatpush.bf16.msra.mxu0 %v901
      %1145 = vmatpush.bf16.msra.mxu0 %v899
      %1146 = vmatpush.bf16.msra.mxu0 %v897
      %1147 = vmatpush.bf16.msra.mxu0 %v895
      %1148 = vmatpush.bf16.msra.mxu0 %v893
      %1149 = vmatpush.bf16.msra.mxu0 %v891
      %1150 = vmatpush.bf16.msra.mxu0 %v889
      %1151 = vmatpush.bf16.msra.mxu0 %v887
      %1152 = vmatmul.bf16.gmra.mxu0 %v1022
      %v1153 = vpop.f32.mrf.mxu0
      %v1154 = vadd.f32 %v929, %v1153
      %v1155 = vpop.f32.mrf.mxu0
      %v1156 = vadd.f32 %v934, %v1155
      %1157 = vmatmul.bf16.gmra.mxu0 %v1024
      %v1158 = vpop.f32.mrf.mxu0
      %v1159 = vadd.f32 %v939, %v1158
      %v1160 = vpop.f32.mrf.mxu0
      %v1161 = vadd.f32 %v944, %v1160
      %1162 = vmatmul.bf16.gmra.mxu0 %v1026
      %v1163 = vpop.f32.mrf.mxu0
      %v1164 = vadd.f32 %v949, %v1163
      %v1165 = vpop.f32.mrf.mxu0
      %v1166 = vadd.f32 %v954, %v1165
      %1167 = vmatmul.bf16.gmra.mxu0 %v1028
      %v1168 = vpop.f32.mrf.mxu0
      %v1169 = vadd.f32 %v959, %v1168
      %v1170 = vpop.f32.mrf.mxu0
      %v1171 = vadd.f32 %v964, %v1170
      %1172 = vmatmul.bf16.gmra.mxu0 %v1030
      %v1173 = vpop.f32.mrf.mxu0
      %v1174 = vadd.f32 %v969, %v1173
      %v1175 = vpop.f32.mrf.mxu0
      %v1176 = vadd.f32 %v974, %v1175
      %1177 = vmatmul.bf16.gmra.mxu0 %v1032
      %v1178 = vpop.f32.mrf.mxu0
      %v1179 = vadd.f32 %v979, %v1178
      %v1180 = vpop.f32.mrf.mxu0
      %v1181 = vadd.f32 %v984, %v1180
      %1182 = vdwg.mxu0
      %1183 = vmatpush.bf16.msra.mxu0 0
      %1184 = vmatpush.bf16.msra.mxu0 0
      %1185 = vmatpush.bf16.msra.mxu0 %v1064
      %1186 = vmatpush.bf16.msra.mxu0 %v911
      %1187 = vmatpush.bf16.msra.mxu0 %v909
      %1188 = vmatpush.bf16.msra.mxu0 %v907
      %1189 = vmatpush.bf16.msra.mxu0 %v905
      %1190 = vmatpush.bf16.msra.mxu0 %v903
      %1191 = vmatmul.bf16.gmra.mxu0 %v1042
      %v1192 = vpop.f32.mrf.mxu0
      %v1193 = vadd.f32 %v1154, %v1192
      %v1194 = vpop.f32.mrf.mxu0
      %v1195 = vadd.f32 %v1156, %v1194
      %1196 = vmatmul.bf16.gmra.mxu0 %v1045
      %v1197 = vpop.f32.mrf.mxu0
      %v1198 = vadd.f32 %v1159, %v1197
      %v1199 = vpop.f32.mrf.mxu0
      %v1200 = vadd.f32 %v1161, %v1199
      %1201 = vmatmul.bf16.gmra.mxu0 %v1048
      %v1202 = vpop.f32.mrf.mxu0
      %v1203 = vadd.f32 %v1164, %v1202
      %v1204 = vpop.f32.mrf.mxu0
      %v1205 = vadd.f32 %v1166, %v1204
      %1206 = vmatmul.bf16.gmra.mxu0 %v1051
      %v1207 = vpop.f32.mrf.mxu0
      %v1208 = vadd.f32 %v1169, %v1207
      %v1209 = vpop.f32.mrf.mxu0
      %v1210 = vadd.f32 %v1171, %v1209
      %1211 = vmatmul.bf16.gmra.mxu0 %v1054
      %v1212 = vpop.f32.mrf.mxu0
      %v1213 = vadd.f32 %v1174, %v1212
      %v1214 = vpop.f32.mrf.mxu0
      %v1215 = vadd.f32 %v1176, %v1214
      %1216 = vmatmul.bf16.gmra.mxu0 %v1057
      %v1217 = vpop.f32.mrf.mxu0
      %v1218 = vadd.f32 %v1179, %v1217
      %v1219 = vpop.f32.mrf.mxu0
      %v1220 = vadd.f32 %v1181, %v1219
      %1221 = vdwg.mxu0
      %1222 = vst [vmem:[%s394] sm:$0xff] %v1115
      %1223 = vst [vmem:[%s394 + $0x8] sm:$0xff] %v1193
      %1224 = vst [vmem:[%s394 + $0x10] sm:$0xff] %v1117
      %1225 = vst [vmem:[%s394 + $0x18] sm:$0xff] %v1195
      %1226 = vst [vmem:[%s394 + $0x20] sm:$0xff] %v1120
      %1227 = vst [vmem:[%s394 + $0x28] sm:$0xff] %v1198
      %1228 = vst [vmem:[%s394 + $0x30] sm:$0xff] %v1122
      %1229 = vst [vmem:[%s394 + $0x38] sm:$0xff] %v1200
      %1230 = vst [vmem:[%s394 + $0x40] sm:$0xff] %v1125
      %1231 = vst [vmem:[%s394 + $0x48] sm:$0xff] %v1203
      %1232 = vst [vmem:[%s394 + $0x50] sm:$0xff] %v1127
      %1233 = vst [vmem:[%s394 + $0x58] sm:$0xff] %v1205
      %1234 = vst [vmem:[%s394 + $0x60] sm:$0xff] %v1130
      %1235 = vst [vmem:[%s394 + $0x68] sm:$0xff] %v1208
      %1236 = vst [vmem:[%s394 + $0x70] sm:$0xff] %v1132
      %1237 = vst [vmem:[%s394 + $0x78] sm:$0xff] %v1210
      %1238 = vst [vmem:[%s394 + $0x80] sm:$0xff] %v1135
      %1239 = vst [vmem:[%s394 + $0x88] sm:$0xff] %v1213
      %1240 = vst [vmem:[%s394 + $0x90] sm:$0xff] %v1137
      %1241 = vst [vmem:[%s394 + $0x98] sm:$0xff] %v1215
      %1242 = vst [vmem:[%s394 + $0xa0] sm:$0xff] %v1140
      %1243 = vst [vmem:[%s394 + $0xa8] sm:$0xff] %v1218
      %1244 = vst [vmem:[%s394 + $0xb0] sm:$0x3] %v1142
      %1245 = vst [vmem:[%s394 + $0xb8] sm:$0x3] %v1220
      %s1246 = smul.u32 2, %s22
      %p1247 = scmp.lt.s32.totalorder %s21, 1
      %s1248 = scalar_select %p1247, %s21, 1
      %p1249 = scmp.lt.s32.totalorder %s1246, 1
      %s1250 = scalar_select %p1249, %s1246, 1
      %s1251 = smul.addr %s1248, 24
      %s1252 = sadd.s32 %s1250, %s1251
      %s1253 = smul.addr %s1252, 8
      %s1254 = scalar_lea.vmem %s6, %s1253
      // Predicated region
      $region45: #{_lambda_.1} parent=43 // pred_check
        %p1255 = pneg %p205
      $region46: #{_lambda_.1} parent=43 // pred_check_branch
        %1257 = sbr.rel (%p1255) target = $region48
      $region47: #{_lambda_.1} parent=43 // pred_region
        %s1258 = smul.u32 2, %s22
      $region48: #{_lambda_.1} parent=43 // pred_fallthru
        _
    $region44: #{_lambda_.1} parent=5 // pred_fallthru
      _
    %p1259 = scmp.le.s32.totalorder 2, %s12
    // Predicated region
    $region49: #{_lambda_.1} parent=5 // pred_check
      %p1260 = pneg %p1259
    $region50: #{_lambda_.1} parent=5 // pred_check_branch
      %1262 = sbr.rel (%p1260) target = $region52
    $region51: #{_lambda_.1} parent=5 // pred_region
      %s1263 = ssub.s32 %s12, 2
      // Predicated region
      $region53: #{_lambda_.1} parent=51 // pred_check
        %p1264 = pneg %p211
      $region54: #{_lambda_.1} parent=51 // pred_check_branch
        %1266 = sbr.rel (%p1264) target = $region56
      $region55: #{_lambda_.1} parent=51 // pred_region
        %s1267 = smul.u32 2, %s24
        %p1268 = scmp.lt.s32.totalorder %s23, 1
        %s1269 = scalar_select %p1268, %s23, 1
        %p1270 = scmp.lt.s32.totalorder %s1267, 1
        %s1271 = scalar_select %p1270, %s1267, 1
        %s1272 = smul.addr %s1269, 24
        %s1273 = sadd.s32 %s1271, %s1272
        %s1274 = smul.addr %s1273, 8
        %s1275 = scalar_lea.vmem %s6, %s1274
      $region56: #{_lambda_.1} parent=51 // pred_fallthru
        _
    $region52: #{_lambda_.1} parent=5 // pred_fallthru
      _
  $region6: #{_lambda_.1} parent=0 // loop_footer
    %s16 = sadd.s32 1, %s12
  $region7: #{_lambda_.1} parent=0 // loop_footer_branch
    %11 = sbr.rel target = $region3
  $region8: #{_lambda_.1} parent=0 // loop_exit
    _

</llo_original>
